<compile_context>
chip_gen: v7x
topology: tpu7x:2x2x1
jax: 0.10.0
libtpu: 0.0.40
codegen_flags: <defaults>
</compile_context>

<pallas_src>
import jax
import jax.numpy as jnp
from jax.experimental import pallas as pl
from jax.experimental.pallas import tpu as pltpu

IN_FEATURES = 3 * 28 * 28   # 2352
HIDDEN = 100
OUT_FEATURES = 10

# Lane-padded (128-aligned) on-device layout sizes.
HIDDEN_PAD = 128
OUT_PAD = 128


def _round_up(x, m):
    return (x + m - 1) // m * m


def _mlp_softmax_kernel(x_ref, w1_ref, b1_ref, w2_ref, b2_ref, w3_ref, b3_ref,
                        o_ref):
    # Weights are bf16; cast activations to bf16 only for the MXU inputs,
    # accumulate in f32 (preferred_element_type), keep elementwise math in
    # f32 (v5e VPU/EUP have no bf16 path).
    xb = x_ref[...].astype(jnp.bfloat16)
    h1 = jnp.dot(xb, w1_ref[...], preferred_element_type=jnp.float32)
    h1 = jnp.maximum(h1 + b1_ref[...], 0.0)

    h2 = jnp.dot(h1.astype(jnp.bfloat16), w2_ref[...],
                 preferred_element_type=jnp.float32)
    h2 = jnp.maximum(h2 + b2_ref[...], 0.0)

    logits = jnp.dot(h2.astype(jnp.bfloat16), w3_ref[...],
                     preferred_element_type=jnp.float32)
    # Padded lane columns of b3 carry -1e30 (baked in pack_params), so the
    # softmax below ignores them with no extra masking work.
    logits = logits + b3_ref[...]

    # Numerically-stable softmax over the class axis; exact normalization so
    # each row sums to 1 up to f32 rounding.
    m = jnp.max(logits, axis=-1, keepdims=True)
    e = jnp.exp(logits - m)
    denom = jnp.sum(e, axis=-1, keepdims=True)
    o_ref[...] = e / denom


def classifier_forward(x, packed_params, *, block_b=512):
    """x: (B, IN_FEATURES) f32 -> (B, OUT_FEATURES) f32 softmax probs."""
    w1, b1, w2, b2, w3, b3 = packed_params
    B = x.shape[0]

    # Batch tile: multiple of 8 sublanes, capped at block_b.
    tb = min(block_b, _round_up(max(B, 1), 8))

    # v7x megacore: prefer >= 2 grid steps when the batch permits, so the
    # "parallel" batch axis can shard across both TensorCores.
    if tb > 8 and _round_up(B, tb) // tb < 2:
        tb = max(8, _round_up((tb + 1) // 2, 8))

    b_pad = _round_up(B, tb)
    if b_pad != B:
        x = jnp.pad(x, ((0, b_pad - B), (0, 0)))

    grid = (b_pad // tb,)

    flops = 2 * B * (IN_FEATURES * HIDDEN + HIDDEN * HIDDEN
                     + HIDDEN * OUT_FEATURES)
    bytes_accessed = (b_pad * IN_FEATURES * 4
                      + (w1.size + w2.size + w3.size) * 2
                      + (b1.size + b2.size + b3.size) * 4
                      + b_pad * OUT_PAD * 4)

    # Explicit VMEM budget: double-buffered x/out tiles + resident weights,
    # with headroom; clamped to stay within v7x's smaller physical VMEM.
    vmem_bytes = (2 * tb * IN_FEATURES * 4
                  + 2 * tb * OUT_PAD * 4
                  + (w1.size + w2.size + w3.size) * 2
                  + (b1.size + b2.size + b3.size) * 4)
    vmem_limit = int(min(max(vmem_bytes + (4 << 20), 16 << 20), 48 << 20))

    def const(shape):
        return pl.BlockSpec(shape, lambda i, _s=len(shape): (0,) * _s)

    out = pl.pallas_call(
        _mlp_softmax_kernel,
        out_shape=jax.ShapeDtypeStruct((b_pad, OUT_PAD), jnp.float32),
        grid=grid,
        in_specs=[
            pl.BlockSpec((tb, IN_FEATURES), lambda i: (i, 0)),   # x tile
            const(w1.shape), const(b1.shape),                     # resident
            const(w2.shape), const(b2.shape),
            const(w3.shape), const(b3.shape),
        ],
        out_specs=pl.BlockSpec((tb, OUT_PAD), lambda i: (i, 0)),
        compiler_params=pltpu.CompilerParams(
            dimension_semantics=("parallel",),                    # megacore
            vmem_limit_bytes=vmem_limit),
        cost_estimate=pl.CostEstimate(
            flops=int(flops),
            transcendentals=int(B * OUT_PAD),
            bytes_accessed=int(bytes_accessed)),
    )(x, w1, b1, w2, b2, w3, b3)

    return out[:B, :OUT_FEATURES]


def init_params(key):
    """Torch-like init. Weights are stored (in, out) = W^T and in bf16;
    biases stay f32 (2-D (1, N) rows for TPU broadcasting)."""
    ks = jax.random.split(key, 6)

    def lin(kw, kb, fan_in, fan_out):
        bound = 1.0 / jnp.sqrt(fan_in)
        w = jax.random.uniform(kw, (fan_in, fan_out), jnp.float32, -bound, bound)
        b = jax.random.uniform(kb, (1, fan_out), jnp.float32, -bound, bound)
        return w.astype(jnp.bfloat16), b

    w1, b1 = lin(ks[0], ks[1], IN_FEATURES, HIDDEN)
    w2, b2 = lin(ks[2], ks[3], HIDDEN, HIDDEN)
    w3, b3 = lin(ks[4], ks[5], HIDDEN, OUT_FEATURES)
    return (w1, b1, w2, b2, w3, b3)


def pack_params(params):
    """Zero-pad the 100/10 lane dims to 128 for a lane-dense MXU/VMEM layout.
    The softmax padding mask is baked into b3: its padded columns are -1e30
    (padded w3 columns are exactly zero, so padded logits equal b3)."""
    w1, b1, w2, b2, w3, b3 = params
    pad_cols = lambda a, n: jnp.pad(a, ((0, 0), (0, n - a.shape[1])))
    pad_rows = lambda a, n: jnp.pad(a, ((0, n - a.shape[0]), (0, 0)))
    w1p = pad_cols(w1, HIDDEN_PAD)
    b1p = pad_cols(b1, HIDDEN_PAD)
    w2p = pad_cols(pad_rows(w2, HIDDEN_PAD), HIDDEN_PAD)
    b2p = pad_cols(b2, HIDDEN_PAD)
    w3p = pad_cols(pad_rows(w3, HIDDEN_PAD), OUT_PAD)
    b3p = jnp.pad(b3, ((0, 0), (0, OUT_PAD - b3.shape[1])),
                  constant_values=-1e30)   # mask baked into bias (stays f32)
    return (w1p, b1p, w2p, b2p, w3p, b3p)


def reference_forward(x, params):
    """Pure-JAX reference using the same bf16-quantized operands."""
    w1, b1, w2, b2, w3, b3 = params
    f32 = jnp.float32
    xb = x.astype(jnp.bfloat16).astype(f32)
    h1 = jnp.maximum(xb @ w1.astype(f32) + b1, 0.0)
    h1b = h1.astype(jnp.bfloat16).astype(f32)
    h2 = jnp.maximum(h1b @ w2.astype(f32) + b2, 0.0)
    h2b = h2.astype(jnp.bfloat16).astype(f32)
    return jax.nn.softmax(h2b @ w3.astype(f32) + b3, axis=-1)


if __name__ == "__main__":
    key = jax.random.PRNGKey(0)
    k_param, k_x = jax.random.split(key)

    params = init_params(k_param)
    packed = pack_params(params)

    # Small-batch check (B=2, single grid step).
    B = 2
    x = jax.random.normal(k_x, (B, IN_FEATURES), dtype=jnp.float32)
    out = jax.block_until_ready(classifier_forward(x, packed))
    ref = reference_forward(x, params)
    assert out.shape == (B, OUT_FEATURES)
    assert jnp.allclose(out, ref, atol=2e-3, rtol=2e-3), "mismatch vs reference"
    assert jnp.allclose(jnp.sum(out, axis=-1), 1.0, atol=2e-3), "rows must sum to 1"

    # Multi-tile check: exercises the batch grid + padding (block of 8 rows).
    B2 = 20
    x2 = jax.random.normal(jax.random.PRNGKey(1), (B2, IN_FEATURES),
                           dtype=jnp.float32)
    out2 = jax.block_until_ready(classifier_forward(x2, packed, block_b=8))
    ref2 = reference_forward(x2, params)
    assert out2.shape == (B2, OUT_FEATURES)
    assert jnp.allclose(out2, ref2, atol=2e-3, rtol=2e-3), "tiled mismatch"
    assert jnp.allclose(jnp.sum(out2, axis=-1), 1.0, atol=2e-3), "tiled rows must sum to 1"

    print("KERNEL_OK")
</pallas_src>

<mosaic_0001>
module attributes {stable_mosaic.version = 11 : i64} {
  func.func @_mlp_softmax_kernel(%arg0: i32, %arg1: memref<8x2352xf32, #tpu.memory_space<vmem>>, %arg2: memref<2352x128xbf16, #tpu.memory_space<vmem>>, %arg3: memref<1x128xf32, #tpu.memory_space<vmem>>, %arg4: memref<128x128xbf16, #tpu.memory_space<vmem>>, %arg5: memref<1x128xf32, #tpu.memory_space<vmem>>, %arg6: memref<128x128xbf16, #tpu.memory_space<vmem>>, %arg7: memref<1x128xf32, #tpu.memory_space<vmem>>, %arg8: memref<8x128xf32, #tpu.memory_space<vmem>>) attributes {dimension_semantics = [#tpu.dimension_semantics<parallel>], iteration_bounds = array<i64: 1>, scalar_prefetch = 0 : i64, scratch_operands = 0 : i64, tpu.core_type = #tpu.core_type<tc>, window_params = [{transform_indices = @transform_0, window_bounds = array<i64: 8, 2352>}, {pipeline_mode = #tpu.pipeline_mode<synchronous>, transform_indices = @transform_1, window_bounds = array<i64: 2352, 128>}, {pipeline_mode = #tpu.pipeline_mode<synchronous>, transform_indices = @transform_2, window_bounds = array<i64: 1, 128>}, {pipeline_mode = #tpu.pipeline_mode<synchronous>, transform_indices = @transform_3, window_bounds = array<i64: 128, 128>}, {pipeline_mode = #tpu.pipeline_mode<synchronous>, transform_indices = @transform_4, window_bounds = array<i64: 1, 128>}, {pipeline_mode = #tpu.pipeline_mode<synchronous>, transform_indices = @transform_5, window_bounds = array<i64: 128, 128>}, {pipeline_mode = #tpu.pipeline_mode<synchronous>, transform_indices = @transform_6, window_bounds = array<i64: 1, 128>}, {transform_indices = @transform_7, window_bounds = array<i64: 8, 128>}]} {
    %c0 = arith.constant 0 : index
    %c0_0 = arith.constant 0 : index
    %0 = vector.load %arg1[%c0, %c0_0] : memref<8x2352xf32, #tpu.memory_space<vmem>>, vector<8x2352xf32>
    %1 = arith.truncf %0 : vector<8x2352xf32> to vector<8x2352xbf16>
    %c0_1 = arith.constant 0 : index
    %c0_2 = arith.constant 0 : index
    %2 = vector.load %arg2[%c0_1, %c0_2] : memref<2352x128xbf16, #tpu.memory_space<vmem>>, vector<2352x128xbf16>
    %cst = arith.constant dense<0.000000e+00> : vector<8x128xf32>
    %3 = tpu.matmul %1, %2, %cst {dimension_numbers = #tpu.dot_dimension_numbers<[1], [0], [0], [1], [0, 0, 1, 1], [], []>} : vector<8x2352xbf16>, vector<2352x128xbf16>, vector<8x128xf32> -> vector<8x128xf32>
    %c0_3 = arith.constant 0 : index
    %c0_4 = arith.constant 0 : index
    %4 = vector.load %arg3[%c0_3, %c0_4] : memref<1x128xf32, #tpu.memory_space<vmem>>, vector<1x128xf32>
    %5 = vector.broadcast %4 : vector<1x128xf32> to vector<8x128xf32>
    %6 = arith.addf %3, %5 : vector<8x128xf32>
    %cst_5 = arith.constant 0.000000e+00 : f32
    %7 = vector.broadcast %cst_5 : f32 to vector<8x128xf32>
    %8 = arith.maximumf %6, %7 : vector<8x128xf32>
    %9 = arith.truncf %8 : vector<8x128xf32> to vector<8x128xbf16>
    %c0_6 = arith.constant 0 : index
    %c0_7 = arith.constant 0 : index
    %10 = vector.load %arg4[%c0_6, %c0_7] : memref<128x128xbf16, #tpu.memory_space<vmem>>, vector<128x128xbf16>
    %cst_8 = arith.constant dense<0.000000e+00> : vector<8x128xf32>
    %11 = tpu.matmul %9, %10, %cst_8 {dimension_numbers = #tpu.dot_dimension_numbers<[1], [0], [0], [1], [0, 0, 1, 1], [], []>} : vector<8x128xbf16>, vector<128x128xbf16>, vector<8x128xf32> -> vector<8x128xf32>
    %c0_9 = arith.constant 0 : index
    %c0_10 = arith.constant 0 : index
    %12 = vector.load %arg5[%c0_9, %c0_10] : memref<1x128xf32, #tpu.memory_space<vmem>>, vector<1x128xf32>
    %13 = vector.broadcast %12 : vector<1x128xf32> to vector<8x128xf32>
    %14 = arith.addf %11, %13 : vector<8x128xf32>
    %cst_11 = arith.constant 0.000000e+00 : f32
    %15 = vector.broadcast %cst_11 : f32 to vector<8x128xf32>
    %16 = arith.maximumf %14, %15 : vector<8x128xf32>
    %17 = arith.truncf %16 : vector<8x128xf32> to vector<8x128xbf16>
    %c0_12 = arith.constant 0 : index
    %c0_13 = arith.constant 0 : index
    %18 = vector.load %arg6[%c0_12, %c0_13] : memref<128x128xbf16, #tpu.memory_space<vmem>>, vector<128x128xbf16>
    %cst_14 = arith.constant dense<0.000000e+00> : vector<8x128xf32>
    %19 = tpu.matmul %17, %18, %cst_14 {dimension_numbers = #tpu.dot_dimension_numbers<[1], [0], [0], [1], [0, 0, 1, 1], [], []>} : vector<8x128xbf16>, vector<128x128xbf16>, vector<8x128xf32> -> vector<8x128xf32>
    %c0_15 = arith.constant 0 : index
    %c0_16 = arith.constant 0 : index
    %20 = vector.load %arg7[%c0_15, %c0_16] : memref<1x128xf32, #tpu.memory_space<vmem>>, vector<1x128xf32>
    %21 = vector.broadcast %20 : vector<1x128xf32> to vector<8x128xf32>
    %22 = arith.addf %19, %21 : vector<8x128xf32>
    %cst_17 = arith.constant dense<0xFF800000> : vector<8xf32>
    %23 = vector.multi_reduction <maximumf>, %22, %cst_17 [1] : vector<8x128xf32> to vector<8xf32>
    %24 = vector.shape_cast %23 : vector<8xf32> to vector<8x1xf32>
    %25 = vector.broadcast %24 : vector<8x1xf32> to vector<8x128xf32>
    %26 = arith.subf %22, %25 : vector<8x128xf32>
    %27 = math.exp %26 : vector<8x128xf32>
    %cst_18 = arith.constant dense<0.000000e+00> : vector<8xf32>
    %28 = vector.multi_reduction <add>, %27, %cst_18 [1] : vector<8x128xf32> to vector<8xf32>
    %29 = vector.shape_cast %28 : vector<8xf32> to vector<8x1xf32>
    %30 = vector.broadcast %29 : vector<8x1xf32> to vector<8x128xf32>
    %31 = arith.divf %27, %30 : vector<8x128xf32>
    %c0_19 = arith.constant 0 : index
    %c0_20 = arith.constant 0 : index
    %32 = vector.load %arg8[%c0_19, %c0_20] : memref<8x128xf32, #tpu.memory_space<vmem>>, vector<8x128xf32>
    tpu.vector_store %arg8[%c0_19, %c0_20], %31 {strides = array<i32>} : memref<8x128xf32, #tpu.memory_space<vmem>>, vector<8x128xf32>,
    return
  }
  func.func @transform_0(%arg0: i32) -> (i32, i32) {
    %c0_i32 = arith.constant 0 : i32
    %c0_i32_0 = arith.constant 0 : i32
    return %arg0, %c0_i32 : i32, i32
  }
  func.func @transform_1(%arg0: i32) -> (i32, i32) {
    %c0_i32 = arith.constant 0 : i32
    %c0_i32_0 = arith.constant 0 : i32
    %c0_i32_1 = arith.constant 0 : i32
    return %c0_i32, %c0_i32_0 : i32, i32
  }
  func.func @transform_2(%arg0: i32) -> (i32, i32) {
    %c0_i32 = arith.constant 0 : i32
    %c0_i32_0 = arith.constant 0 : i32
    %c0_i32_1 = arith.constant 0 : i32
    return %c0_i32, %c0_i32_0 : i32, i32
  }
  func.func @transform_3(%arg0: i32) -> (i32, i32) {
    %c0_i32 = arith.constant 0 : i32
    %c0_i32_0 = arith.constant 0 : i32
    %c0_i32_1 = arith.constant 0 : i32
    return %c0_i32, %c0_i32_0 : i32, i32
  }
  func.func @transform_4(%arg0: i32) -> (i32, i32) {
    %c0_i32 = arith.constant 0 : i32
    %c0_i32_0 = arith.constant 0 : i32
    %c0_i32_1 = arith.constant 0 : i32
    return %c0_i32, %c0_i32_0 : i32, i32
  }
  func.func @transform_5(%arg0: i32) -> (i32, i32) {
    %c0_i32 = arith.constant 0 : i32
    %c0_i32_0 = arith.constant 0 : i32
    %c0_i32_1 = arith.constant 0 : i32
    return %c0_i32, %c0_i32_0 : i32, i32
  }
  func.func @transform_6(%arg0: i32) -> (i32, i32) {
    %c0_i32 = arith.constant 0 : i32
    %c0_i32_0 = arith.constant 0 : i32
    %c0_i32_1 = arith.constant 0 : i32
    return %c0_i32, %c0_i32_0 : i32, i32
  }
  func.func @transform_7(%arg0: i32) -> (i32, i32) {
    %c0_i32 = arith.constant 0 : i32
    %c0_i32_0 = arith.constant 0 : i32
    return %arg0, %c0_i32 : i32, i32
  }
}

</mosaic_0001>

<llo_original>
// kernel: tpu_custom_call.1
$region0: #{tpu_custom_call.1}
  #allocation0 [shape = 'u32[]', space=smem, size = 0x4, offset = 0x4, fixed_abs, tag = 'smem constant byte address 0x4 - core index']
  #allocation1 [shape = 'u32[144,128]{1,0:T(1,128)}', space=vmem, size = 0x12000, scoped, tag = 'internal scratch']
  %s0 = inlined_call_operand.hbm [shape: f32[8,2352], index: 0, kind: input, shape index: {}]
  %s1 = inlined_call_operand.hbm [shape: bf16[2352,128], index: 1, kind: input, shape index: {}]
  %s2 = inlined_call_operand.vmem [shape: f32[1,128], index: 2, kind: input, shape index: {}]
  %s3 = inlined_call_operand.hbm [shape: bf16[128,128], index: 3, kind: input, shape index: {}]
  %s4 = inlined_call_operand.vmem [shape: f32[1,128], index: 4, kind: input, shape index: {}]
  %s5 = inlined_call_operand.hbm [shape: bf16[128,128], index: 5, kind: input, shape index: {}]
  %s6 = inlined_call_operand.vmem [shape: f32[1,128], index: 6, kind: input, shape index: {}]
  %s7 = inlined_call_operand.hbm [shape: f32[8,128], index: 7, kind: output, shape index: {}]
  %s8 = sld [smem:[#allocation0]]
  $region54: #{tpu_custom_call.1} parent=0
    _
  %s10 = ssub.s32 1, %s8
  %s11 = scalar_select 0, %s10, %s8
  $region1: #{tpu_custom_call.1} parent=0
    #allocation2 [shape = 'u8[77824]{0}', space=vmem, size = 0x13000, scoped, tag = 'input window, operand 0, single buffered']
    #allocation3 [shape = 's32[1]{0}', space=sflag, size = 0x4, scoped, tag = 'scoped memory for tpu_custom_call.1']
    #allocation4 [shape = 's32[1]{0}', space=sflag, size = 0x4, scoped, tag = 'scoped memory for tpu_custom_call.1']
    #allocation5 [shape = 'u8[602112]{0}', space=vmem, size = 0x93000, scoped, tag = 'input window, operand 1, single buffered']
    #allocation6 [shape = 's32[1]{0}', space=sflag, size = 0x4, scoped, tag = 'scoped memory for tpu_custom_call.1']
    #allocation7 [shape = 'u8[32768]{0}', space=vmem, size = 0x8000, scoped, tag = 'input window, operand 3, single buffered']
    #allocation8 [shape = 'u8[32768]{0}', space=vmem, size = 0x8000, scoped, tag = 'input window, operand 5, single buffered']
    #allocation9 [shape = 's32[1]{0}', space=sflag, size = 0x4, scoped, tag = 'scoped memory for tpu_custom_call.1']
    #allocation10 [shape = 'u8[4096]{0}', space=vmem, size = 0x1000, scoped, tag = 'output window, operand 0, single buffered']
    %12 = vsyncpa [#allocation3], 0
    %13 = vsyncpa [#allocation6], 0
    %14 = vsyncpa [#allocation9], 0
    %15 = vsyncpa [#allocation4], 0
    // Predicated region
    $region2: #{tpu_custom_call.1} parent=1 // pred_check
      _
    $region3: #{tpu_custom_call.1} parent=1 // pred_check_branch
      %17 = sbr.rel (0) target = $region5
    $region4: #{tpu_custom_call.1} parent=1 // pred_region
      %s19 = ssub.s32 2432, 2432
      %20 = vsyncadd [#allocation3], %s19
      %s22 = sshll.u32 [#allocation2], 4
      %s23 = int_to_ptr.vmem [resolvable:$true] %s22
      %25 = dma.hbm_to_vmem [thread:$0]  %s0, 2432, %s23, [#allocation3]
    $region5: #{tpu_custom_call.1} parent=1 // pred_fallthru
      _
    // Predicated region
    $region6: #{tpu_custom_call.1} parent=1 // pred_check
      _
    $region7: #{tpu_custom_call.1} parent=1 // pred_check_branch
      %27 = sbr.rel (0) target = $region9
    $region8: #{tpu_custom_call.1} parent=1 // pred_region
      %s29 = ssub.s32 18816, 18816
      %30 = vsyncadd [#allocation6], %s29
      %s31 = sshll.u32 [#allocation5], 4
      %s32 = int_to_ptr.vmem [resolvable:$true] %s31
      %37 = dma.hbm_to_vmem [thread:$0]  %s1, 18816, %s32, [#allocation6], 64, 64, 4
    $region9: #{tpu_custom_call.1} parent=1 // pred_fallthru
      _
    // Predicated region
    $region10: #{tpu_custom_call.1} parent=1 // pred_check
      _
    $region11: #{tpu_custom_call.1} parent=1 // pred_check_branch
      %39 = sbr.rel (0) target = $region13
    $region12: #{tpu_custom_call.1} parent=1 // pred_region
      _
    $region13: #{tpu_custom_call.1} parent=1 // pred_fallthru
      _
    // Predicated region
    $region14: #{tpu_custom_call.1} parent=1 // pred_check
      _
    $region15: #{tpu_custom_call.1} parent=1 // pred_check_branch
      %41 = sbr.rel (0) target = $region17
    $region16: #{tpu_custom_call.1} parent=1 // pred_region
      %s43 = ssub.s32 1024, 1024
      %44 = vsyncadd [#allocation6], %s43
      %s45 = sshll.u32 [#allocation7], 4
      %s46 = int_to_ptr.vmem [resolvable:$true] %s45
      %51 = dma.hbm_to_vmem [thread:$0]  %s3, 1024, %s46, [#allocation6], 64, 64, 4
    $region17: #{tpu_custom_call.1} parent=1 // pred_fallthru
      _
    // Predicated region
    $region18: #{tpu_custom_call.1} parent=1 // pred_check
      _
    $region19: #{tpu_custom_call.1} parent=1 // pred_check_branch
      %53 = sbr.rel (0) target = $region21
    $region20: #{tpu_custom_call.1} parent=1 // pred_region
      _
    $region21: #{tpu_custom_call.1} parent=1 // pred_fallthru
      _
    // Predicated region
    $region22: #{tpu_custom_call.1} parent=1 // pred_check
      _
    $region23: #{tpu_custom_call.1} parent=1 // pred_check_branch
      %55 = sbr.rel (0) target = $region25
    $region24: #{tpu_custom_call.1} parent=1 // pred_region
      %s57 = ssub.s32 1024, 1024
      %58 = vsyncadd [#allocation9], %s57
      %s59 = sshll.u32 [#allocation8], 4
      %s60 = int_to_ptr.vmem [resolvable:$true] %s59
      %65 = dma.hbm_to_vmem [thread:$0]  %s5, 1024, %s60, [#allocation9], 64, 64, 4
    $region25: #{tpu_custom_call.1} parent=1 // pred_fallthru
      _
    // Predicated region
    $region26: #{tpu_custom_call.1} parent=1 // pred_check
      _
    $region27: #{tpu_custom_call.1} parent=1 // pred_check_branch
      %67 = sbr.rel (0) target = $region29
    $region28: #{tpu_custom_call.1} parent=1 // pred_region
      _
    $region29: #{tpu_custom_call.1} parent=1 // pred_fallthru
      _
    // Predicated region
    $region30: #{tpu_custom_call.1} parent=1 // pred_check
      _
    $region31: #{tpu_custom_call.1} parent=1 // pred_check_branch
      %69 = sbr.rel (0) target = $region33
    $region32: #{tpu_custom_call.1} parent=1 // pred_region
      %70 = dma.done [#allocation3], 2432
    $region33: #{tpu_custom_call.1} parent=1 // pred_fallthru
      _
    // Predicated region
    $region34: #{tpu_custom_call.1} parent=1 // pred_check
      _
    $region35: #{tpu_custom_call.1} parent=1 // pred_check_branch
      %72 = sbr.rel (0) target = $region37
    $region36: #{tpu_custom_call.1} parent=1 // pred_region
      %73 = dma.done [#allocation6], 18816
    $region37: #{tpu_custom_call.1} parent=1 // pred_fallthru
      _
    // Predicated region
    $region38: #{tpu_custom_call.1} parent=1 // pred_check
      _
    $region39: #{tpu_custom_call.1} parent=1 // pred_check_branch
      %75 = sbr.rel (0) target = $region41
    $region40: #{tpu_custom_call.1} parent=1 // pred_region
      %76 = dma.done [#allocation6], 1024
    $region41: #{tpu_custom_call.1} parent=1 // pred_fallthru
      _
    // Predicated region
    $region42: #{tpu_custom_call.1} parent=1 // pred_check
      _
    $region43: #{tpu_custom_call.1} parent=1 // pred_check_branch
      %78 = sbr.rel (0) target = $region45
    $region44: #{tpu_custom_call.1} parent=1 // pred_region
      %79 = dma.done [#allocation9], 1024
    $region45: #{tpu_custom_call.1} parent=1 // pred_fallthru
      _
    %v81 = vld [vmem:[#allocation2] sm:$0xff]
    %v82 = vld [vmem:[#allocation2 + $0x8] sm:$0xff]
    %v83 = vld [vmem:[#allocation2 + $0x10] sm:$0xff]
    %v84 = vld [vmem:[#allocation2 + $0x18] sm:$0xff]
    %v85 = vld [vmem:[#allocation2 + $0x20] sm:$0xff]
    %v86 = vld [vmem:[#allocation2 + $0x28] sm:$0xff]
    %v87 = vld [vmem:[#allocation2 + $0x30] sm:$0xff]
    %v88 = vld [vmem:[#allocation2 + $0x38] sm:$0xff]
    %v89 = vld [vmem:[#allocation2 + $0x40] sm:$0xff]
    %v90 = vld [vmem:[#allocation2 + $0x48] sm:$0xff]
    %v91 = vld [vmem:[#allocation2 + $0x50] sm:$0xff]
    %v92 = vld [vmem:[#allocation2 + $0x58] sm:$0xff]
    %v93 = vld [vmem:[#allocation2 + $0x60] sm:$0xff]
    %v94 = vld [vmem:[#allocation2 + $0x68] sm:$0xff]
    %v95 = vld [vmem:[#allocation2 + $0x70] sm:$0xff]
    %v96 = vld [vmem:[#allocation2 + $0x78] sm:$0xff]
    %v97 = vld [vmem:[#allocation2 + $0x80] sm:$0xff]
    %v98 = vld [vmem:[#allocation2 + $0x88] sm:$0xff]
    %v99 = vld [vmem:[#allocation2 + $0x90] sm:$0xff]
    %v100 = vpack.c.bf16 %v81, %v81
    %v101 = vpack.c.bf16 %v82, %v82
    %v102 = vpack.c.bf16 %v83, %v83
    %v103 = vpack.c.bf16 %v84, %v84
    %v104 = vpack.c.bf16 %v85, %v85
    %v105 = vpack.c.bf16 %v86, %v86
    %v106 = vpack.c.bf16 %v87, %v87
    %v107 = vpack.c.bf16 %v88, %v88
    %v108 = vpack.c.bf16 %v89, %v89
    %v109 = vpack.c.bf16 %v90, %v90
    %v110 = vpack.c.bf16 %v91, %v91
    %v111 = vpack.c.bf16 %v92, %v92
    %v112 = vpack.c.bf16 %v93, %v93
    %v113 = vpack.c.bf16 %v94, %v94
    %v114 = vpack.c.bf16 %v95, %v95
    %v115 = vpack.c.bf16 %v96, %v96
    %v116 = vpack.c.bf16 %v97, %v97
    %v117 = vpack.c.bf16 %v98, %v98
    %v118 = vpack.c.bf16 %v99, %v99
    %v119 = vld [vmem:[#allocation5] sm:$0xf]
    %v120 = vld [vmem:[#allocation5 + $0x4] sm:$0xf]
    %v121 = vld [vmem:[#allocation5 + $0x8] sm:$0xf]
    %v122 = vld [vmem:[#allocation5 + $0xc] sm:$0xf]
    %v123 = vld [vmem:[#allocation5 + $0x10] sm:$0xf]
    %v124 = vld [vmem:[#allocation5 + $0x14] sm:$0xf]
    %v125 = vld [vmem:[#allocation5 + $0x18] sm:$0xf]
    %v126 = vld [vmem:[#allocation5 + $0x1c] sm:$0xf]
    %v127 = vld [vmem:[#allocation5 + $0x20] sm:$0xf]
    %v128 = vld [vmem:[#allocation5 + $0x24] sm:$0xf]
    %v129 = vld [vmem:[#allocation5 + $0x28] sm:$0xf]
    %v130 = vld [vmem:[#allocation5 + $0x2c] sm:$0xf]
    %v131 = vld [vmem:[#allocation5 + $0x30] sm:$0xf]
    %v132 = vld [vmem:[#allocation5 + $0x34] sm:$0xf]
    %v133 = vld [vmem:[#allocation5 + $0x38] sm:$0xf]
    %v134 = vld [vmem:[#allocation5 + $0x3c] sm:$0xf]
    %v135 = vld [vmem:[#allocation5 + $0x40] sm:$0xf]
    %v136 = vld [vmem:[#allocation5 + $0x44] sm:$0xf]
    %v137 = vld [vmem:[#allocation5 + $0x48] sm:$0xf]
    %v138 = vld [vmem:[#allocation5 + $0x4c] sm:$0xf]
    %v139 = vld [vmem:[#allocation5 + $0x50] sm:$0xf]
    %v140 = vld [vmem:[#allocation5 + $0x54] sm:$0xf]
    %v141 = vld [vmem:[#allocation5 + $0x58] sm:$0xf]
    %v142 = vld [vmem:[#allocation5 + $0x5c] sm:$0xf]
    %v143 = vld [vmem:[#allocation5 + $0x60] sm:$0xf]
    %v144 = vld [vmem:[#allocation5 + $0x64] sm:$0xf]
    %v145 = vld [vmem:[#allocation5 + $0x68] sm:$0xf]
    %v146 = vld [vmem:[#allocation5 + $0x6c] sm:$0xf]
    %v147 = vld [vmem:[#allocation5 + $0x70] sm:$0xf]
    %v148 = vld [vmem:[#allocation5 + $0x74] sm:$0xf]
    %v149 = vld [vmem:[#allocation5 + $0x78] sm:$0xf]
    %v150 = vld [vmem:[#allocation5 + $0x7c] sm:$0xf]
    %v151 = vld [vmem:[#allocation5 + $0x80] sm:$0xf]
    %v152 = vld [vmem:[#allocation5 + $0x84] sm:$0xf]
    %v153 = vld [vmem:[#allocation5 + $0x88] sm:$0xf]
    %v154 = vld [vmem:[#allocation5 + $0x8c] sm:$0xf]
    %v155 = vld [vmem:[#allocation5 + $0x90] sm:$0xf]
    %v156 = vld [vmem:[#allocation5 + $0x94] sm:$0xf]
    %v157 = vld [vmem:[#allocation5 + $0x98] sm:$0xf]
    %v158 = vld [vmem:[#allocation5 + $0x9c] sm:$0xf]
    %v159 = vld [vmem:[#allocation5 + $0xa0] sm:$0xf]
    %v160 = vld [vmem:[#allocation5 + $0xa4] sm:$0xf]
    %v161 = vld [vmem:[#allocation5 + $0xa8] sm:$0xf]
    %v162 = vld [vmem:[#allocation5 + $0xac] sm:$0xf]
    %v163 = vld [vmem:[#allocation5 + $0xb0] sm:$0xf]
    %v164 = vld [vmem:[#allocation5 + $0xb4] sm:$0xf]
    %v165 = vld [vmem:[#allocation5 + $0xb8] sm:$0xf]
    %v166 = vld [vmem:[#allocation5 + $0xbc] sm:$0xf]
    %v167 = vld [vmem:[#allocation5 + $0xc0] sm:$0xf]
    %v168 = vld [vmem:[#allocation5 + $0xc4] sm:$0xf]
    %v169 = vld [vmem:[#allocation5 + $0xc8] sm:$0xf]
    %v170 = vld [vmem:[#allocation5 + $0xcc] sm:$0xf]
    %v171 = vld [vmem:[#allocation5 + $0xd0] sm:$0xf]
    %v172 = vld [vmem:[#allocation5 + $0xd4] sm:$0xf]
    %v173 = vld [vmem:[#allocation5 + $0xd8] sm:$0xf]
    %v174 = vld [vmem:[#allocation5 + $0xdc] sm:$0xf]
    %v175 = vld [vmem:[#allocation5 + $0xe0] sm:$0xf]
    %v176 = vld [vmem:[#allocation5 + $0xe4] sm:$0xf]
    %v177 = vld [vmem:[#allocation5 + $0xe8] sm:$0xf]
    %v178 = vld [vmem:[#allocation5 + $0xec] sm:$0xf]
    %v179 = vld [vmem:[#allocation5 + $0xf0] sm:$0xf]
    %v180 = vld [vmem:[#allocation5 + $0xf4] sm:$0xf]
    %v181 = vld [vmem:[#allocation5 + $0xf8] sm:$0xf]
    %v182 = vld [vmem:[#allocation5 + $0xfc] sm:$0xf]
    %v183 = vld [vmem:[#allocation5 + $0x100] sm:$0xf]
    %v184 = vld [vmem:[#allocation5 + $0x104] sm:$0xf]
    %v185 = vld [vmem:[#allocation5 + $0x108] sm:$0xf]
    %v186 = vld [vmem:[#allocation5 + $0x10c] sm:$0xf]
    %v187 = vld [vmem:[#allocation5 + $0x110] sm:$0xf]
    %v188 = vld [vmem:[#allocation5 + $0x114] sm:$0xf]
    %v189 = vld [vmem:[#allocation5 + $0x118] sm:$0xf]
    %v190 = vld [vmem:[#allocation5 + $0x11c] sm:$0xf]
    %v191 = vld [vmem:[#allocation5 + $0x120] sm:$0xf]
    %v192 = vld [vmem:[#allocation5 + $0x124] sm:$0xf]
    %v193 = vld [vmem:[#allocation5 + $0x128] sm:$0xf]
    %v194 = vld [vmem:[#allocation5 + $0x12c] sm:$0xf]
    %v195 = vld [vmem:[#allocation5 + $0x130] sm:$0xf]
    %v196 = vld [vmem:[#allocation5 + $0x134] sm:$0xf]
    %v197 = vld [vmem:[#allocation5 + $0x138] sm:$0xf]
    %v198 = vld [vmem:[#allocation5 + $0x13c] sm:$0xf]
    %v199 = vld [vmem:[#allocation5 + $0x140] sm:$0xf]
    %v200 = vld [vmem:[#allocation5 + $0x144] sm:$0xf]
    %v201 = vld [vmem:[#allocation5 + $0x148] sm:$0xf]
    %v202 = vld [vmem:[#allocation5 + $0x14c] sm:$0xf]
    %v203 = vld [vmem:[#allocation5 + $0x150] sm:$0xf]
    %v204 = vld [vmem:[#allocation5 + $0x154] sm:$0xf]
    %v205 = vld [vmem:[#allocation5 + $0x158] sm:$0xf]
    %v206 = vld [vmem:[#allocation5 + $0x15c] sm:$0xf]
    %v207 = vld [vmem:[#allocation5 + $0x160] sm:$0xf]
    %v208 = vld [vmem:[#allocation5 + $0x164] sm:$0xf]
    %v209 = vld [vmem:[#allocation5 + $0x168] sm:$0xf]
    %v210 = vld [vmem:[#allocation5 + $0x16c] sm:$0xf]
    %v211 = vld [vmem:[#allocation5 + $0x170] sm:$0xf]
    %v212 = vld [vmem:[#allocation5 + $0x174] sm:$0xf]
    %v213 = vld [vmem:[#allocation5 + $0x178] sm:$0xf]
    %v214 = vld [vmem:[#allocation5 + $0x17c] sm:$0xf]
    %v215 = vld [vmem:[#allocation5 + $0x180] sm:$0xf]
    %v216 = vld [vmem:[#allocation5 + $0x184] sm:$0xf]
    %v217 = vld [vmem:[#allocation5 + $0x188] sm:$0xf]
    %v218 = vld [vmem:[#allocation5 + $0x18c] sm:$0xf]
    %v219 = vld [vmem:[#allocation5 + $0x190] sm:$0xf]
    %v220 = vld [vmem:[#allocation5 + $0x194] sm:$0xf]
    %v221 = vld [vmem:[#allocation5 + $0x198] sm:$0xf]
    %v222 = vld [vmem:[#allocation5 + $0x19c] sm:$0xf]
    %v223 = vld [vmem:[#allocation5 + $0x1a0] sm:$0xf]
    %v224 = vld [vmem:[#allocation5 + $0x1a4] sm:$0xf]
    %v225 = vld [vmem:[#allocation5 + $0x1a8] sm:$0xf]
    %v226 = vld [vmem:[#allocation5 + $0x1ac] sm:$0xf]
    %v227 = vld [vmem:[#allocation5 + $0x1b0] sm:$0xf]
    %v228 = vld [vmem:[#allocation5 + $0x1b4] sm:$0xf]
    %v229 = vld [vmem:[#allocation5 + $0x1b8] sm:$0xf]
    %v230 = vld [vmem:[#allocation5 + $0x1bc] sm:$0xf]
    %v231 = vld [vmem:[#allocation5 + $0x1c0] sm:$0xf]
    %v232 = vld [vmem:[#allocation5 + $0x1c4] sm:$0xf]
    %v233 = vld [vmem:[#allocation5 + $0x1c8] sm:$0xf]
    %v234 = vld [vmem:[#allocation5 + $0x1cc] sm:$0xf]
    %v235 = vld [vmem:[#allocation5 + $0x1d0] sm:$0xf]
    %v236 = vld [vmem:[#allocation5 + $0x1d4] sm:$0xf]
    %v237 = vld [vmem:[#allocation5 + $0x1d8] sm:$0xf]
    %v238 = vld [vmem:[#allocation5 + $0x1dc] sm:$0xf]
    %v239 = vld [vmem:[#allocation5 + $0x1e0] sm:$0xf]
    %v240 = vld [vmem:[#allocation5 + $0x1e4] sm:$0xf]
    %v241 = vld [vmem:[#allocation5 + $0x1e8] sm:$0xf]
    %v242 = vld [vmem:[#allocation5 + $0x1ec] sm:$0xf]
    %v243 = vld [vmem:[#allocation5 + $0x1f0] sm:$0xf]
    %v244 = vld [vmem:[#allocation5 + $0x1f4] sm:$0xf]
    %v245 = vld [vmem:[#allocation5 + $0x1f8] sm:$0xf]
    %v246 = vld [vmem:[#allocation5 + $0x1fc] sm:$0xf]
    %v247 = vld [vmem:[#allocation5 + $0x200] sm:$0xf]
    %v248 = vld [vmem:[#allocation5 + $0x204] sm:$0xf]
    %v249 = vld [vmem:[#allocation5 + $0x208] sm:$0xf]
    %v250 = vld [vmem:[#allocation5 + $0x20c] sm:$0xf]
    %v251 = vld [vmem:[#allocation5 + $0x210] sm:$0xf]
    %v252 = vld [vmem:[#allocation5 + $0x214] sm:$0xf]
    %v253 = vld [vmem:[#allocation5 + $0x218] sm:$0xf]
    %v254 = vld [vmem:[#allocation5 + $0x21c] sm:$0xf]
    %v255 = vld [vmem:[#allocation5 + $0x220] sm:$0xf]
    %v256 = vld [vmem:[#allocation5 + $0x224] sm:$0xf]
    %v257 = vld [vmem:[#allocation5 + $0x228] sm:$0xf]
    %v258 = vld [vmem:[#allocation5 + $0x22c] sm:$0xf]
    %v259 = vld [vmem:[#allocation5 + $0x230] sm:$0xf]
    %v260 = vld [vmem:[#allocation5 + $0x234] sm:$0xf]
    %v261 = vld [vmem:[#allocation5 + $0x238] sm:$0xf]
    %v262 = vld [vmem:[#allocation5 + $0x23c] sm:$0xf]
    %v263 = vld [vmem:[#allocation5 + $0x240] sm:$0xf]
    %v264 = vld [vmem:[#allocation5 + $0x244] sm:$0xf]
    %v265 = vld [vmem:[#allocation5 + $0x248] sm:$0xf]
    %v266 = vld [vmem:[#allocation5 + $0x24c] sm:$0xf]
    %v267 = vld [vmem:[#allocation5 + $0x250] sm:$0xf]
    %v268 = vld [vmem:[#allocation5 + $0x254] sm:$0xf]
    %v269 = vld [vmem:[#allocation5 + $0x258] sm:$0xf]
    %v270 = vld [vmem:[#allocation5 + $0x25c] sm:$0xf]
    %v271 = vld [vmem:[#allocation5 + $0x260] sm:$0xf]
    %v272 = vld [vmem:[#allocation5 + $0x264] sm:$0xf]
    %v273 = vld [vmem:[#allocation5 + $0x268] sm:$0xf]
    %v274 = vld [vmem:[#allocation5 + $0x26c] sm:$0xf]
    %v275 = vld [vmem:[#allocation5 + $0x270] sm:$0xf]
    %v276 = vld [vmem:[#allocation5 + $0x274] sm:$0xf]
    %v277 = vld [vmem:[#allocation5 + $0x278] sm:$0xf]
    %v278 = vld [vmem:[#allocation5 + $0x27c] sm:$0xf]
    %v279 = vld [vmem:[#allocation5 + $0x280] sm:$0xf]
    %v280 = vld [vmem:[#allocation5 + $0x284] sm:$0xf]
    %v281 = vld [vmem:[#allocation5 + $0x288] sm:$0xf]
    %v282 = vld [vmem:[#allocation5 + $0x28c] sm:$0xf]
    %v283 = vld [vmem:[#allocation5 + $0x290] sm:$0xf]
    %v284 = vld [vmem:[#allocation5 + $0x294] sm:$0xf]
    %v285 = vld [vmem:[#allocation5 + $0x298] sm:$0xf]
    %v286 = vld [vmem:[#allocation5 + $0x29c] sm:$0xf]
    %v287 = vld [vmem:[#allocation5 + $0x2a0] sm:$0xf]
    %v288 = vld [vmem:[#allocation5 + $0x2a4] sm:$0xf]
    %v289 = vld [vmem:[#allocation5 + $0x2a8] sm:$0xf]
    %v290 = vld [vmem:[#allocation5 + $0x2ac] sm:$0xf]
    %v291 = vld [vmem:[#allocation5 + $0x2b0] sm:$0xf]
    %v292 = vld [vmem:[#allocation5 + $0x2b4] sm:$0xf]
    %v293 = vld [vmem:[#allocation5 + $0x2b8] sm:$0xf]
    %v294 = vld [vmem:[#allocation5 + $0x2bc] sm:$0xf]
    %v295 = vld [vmem:[#allocation5 + $0x2c0] sm:$0xf]
    %v296 = vld [vmem:[#allocation5 + $0x2c4] sm:$0xf]
    %v297 = vld [vmem:[#allocation5 + $0x2c8] sm:$0xf]
    %v298 = vld [vmem:[#allocation5 + $0x2cc] sm:$0xf]
    %v299 = vld [vmem:[#allocation5 + $0x2d0] sm:$0xf]
    %v300 = vld [vmem:[#allocation5 + $0x2d4] sm:$0xf]
    %v301 = vld [vmem:[#allocation5 + $0x2d8] sm:$0xf]
    %v302 = vld [vmem:[#allocation5 + $0x2dc] sm:$0xf]
    %v303 = vld [vmem:[#allocation5 + $0x2e0] sm:$0xf]
    %v304 = vld [vmem:[#allocation5 + $0x2e4] sm:$0xf]
    %v305 = vld [vmem:[#allocation5 + $0x2e8] sm:$0xf]
    %v306 = vld [vmem:[#allocation5 + $0x2ec] sm:$0xf]
    %v307 = vld [vmem:[#allocation5 + $0x2f0] sm:$0xf]
    %v308 = vld [vmem:[#allocation5 + $0x2f4] sm:$0xf]
    %v309 = vld [vmem:[#allocation5 + $0x2f8] sm:$0xf]
    %v310 = vld [vmem:[#allocation5 + $0x2fc] sm:$0xf]
    %v311 = vld [vmem:[#allocation5 + $0x300] sm:$0xf]
    %v312 = vld [vmem:[#allocation5 + $0x304] sm:$0xf]
    %v313 = vld [vmem:[#allocation5 + $0x308] sm:$0xf]
    %v314 = vld [vmem:[#allocation5 + $0x30c] sm:$0xf]
    %v315 = vld [vmem:[#allocation5 + $0x310] sm:$0xf]
    %v316 = vld [vmem:[#allocation5 + $0x314] sm:$0xf]
    %v317 = vld [vmem:[#allocation5 + $0x318] sm:$0xf]
    %v318 = vld [vmem:[#allocation5 + $0x31c] sm:$0xf]
    %v319 = vld [vmem:[#allocation5 + $0x320] sm:$0xf]
    %v320 = vld [vmem:[#allocation5 + $0x324] sm:$0xf]
    %v321 = vld [vmem:[#allocation5 + $0x328] sm:$0xf]
    %v322 = vld [vmem:[#allocation5 + $0x32c] sm:$0xf]
    %v323 = vld [vmem:[#allocation5 + $0x330] sm:$0xf]
    %v324 = vld [vmem:[#allocation5 + $0x334] sm:$0xf]
    %v325 = vld [vmem:[#allocation5 + $0x338] sm:$0xf]
    %v326 = vld [vmem:[#allocation5 + $0x33c] sm:$0xf]
    %v327 = vld [vmem:[#allocation5 + $0x340] sm:$0xf]
    %v328 = vld [vmem:[#allocation5 + $0x344] sm:$0xf]
    %v329 = vld [vmem:[#allocation5 + $0x348] sm:$0xf]
    %v330 = vld [vmem:[#allocation5 + $0x34c] sm:$0xf]
    %v331 = vld [vmem:[#allocation5 + $0x350] sm:$0xf]
    %v332 = vld [vmem:[#allocation5 + $0x354] sm:$0xf]
    %v333 = vld [vmem:[#allocation5 + $0x358] sm:$0xf]
    %v334 = vld [vmem:[#allocation5 + $0x35c] sm:$0xf]
    %v335 = vld [vmem:[#allocation5 + $0x360] sm:$0xf]
    %v336 = vld [vmem:[#allocation5 + $0x364] sm:$0xf]
    %v337 = vld [vmem:[#allocation5 + $0x368] sm:$0xf]
    %v338 = vld [vmem:[#allocation5 + $0x36c] sm:$0xf]
    %v339 = vld [vmem:[#allocation5 + $0x370] sm:$0xf]
    %v340 = vld [vmem:[#allocation5 + $0x374] sm:$0xf]
    %v341 = vld [vmem:[#allocation5 + $0x378] sm:$0xf]
    %v342 = vld [vmem:[#allocation5 + $0x37c] sm:$0xf]
    %v343 = vld [vmem:[#allocation5 + $0x380] sm:$0xf]
    %v344 = vld [vmem:[#allocation5 + $0x384] sm:$0xf]
    %v345 = vld [vmem:[#allocation5 + $0x388] sm:$0xf]
    %v346 = vld [vmem:[#allocation5 + $0x38c] sm:$0xf]
    %v347 = vld [vmem:[#allocation5 + $0x390] sm:$0xf]
    %v348 = vld [vmem:[#allocation5 + $0x394] sm:$0xf]
    %v349 = vld [vmem:[#allocation5 + $0x398] sm:$0xf]
    %v350 = vld [vmem:[#allocation5 + $0x39c] sm:$0xf]
    %v351 = vld [vmem:[#allocation5 + $0x3a0] sm:$0xf]
    %v352 = vld [vmem:[#allocation5 + $0x3a4] sm:$0xf]
    %v353 = vld [vmem:[#allocation5 + $0x3a8] sm:$0xf]
    %v354 = vld [vmem:[#allocation5 + $0x3ac] sm:$0xf]
    %v355 = vld [vmem:[#allocation5 + $0x3b0] sm:$0xf]
    %v356 = vld [vmem:[#allocation5 + $0x3b4] sm:$0xf]
    %v357 = vld [vmem:[#allocation5 + $0x3b8] sm:$0xf]
    %v358 = vld [vmem:[#allocation5 + $0x3bc] sm:$0xf]
    %v359 = vld [vmem:[#allocation5 + $0x3c0] sm:$0xf]
    %v360 = vld [vmem:[#allocation5 + $0x3c4] sm:$0xf]
    %v361 = vld [vmem:[#allocation5 + $0x3c8] sm:$0xf]
    %v362 = vld [vmem:[#allocation5 + $0x3cc] sm:$0xf]
    %v363 = vld [vmem:[#allocation5 + $0x3d0] sm:$0xf]
    %v364 = vld [vmem:[#allocation5 + $0x3d4] sm:$0xf]
    %v365 = vld [vmem:[#allocation5 + $0x3d8] sm:$0xf]
    %v366 = vld [vmem:[#allocation5 + $0x3dc] sm:$0xf]
    %v367 = vld [vmem:[#allocation5 + $0x3e0] sm:$0xf]
    %v368 = vld [vmem:[#allocation5 + $0x3e4] sm:$0xf]
    %v369 = vld [vmem:[#allocation5 + $0x3e8] sm:$0xf]
    %v370 = vld [vmem:[#allocation5 + $0x3ec] sm:$0xf]
    %v371 = vld [vmem:[#allocation5 + $0x3f0] sm:$0xf]
    %v372 = vld [vmem:[#allocation5 + $0x3f4] sm:$0xf]
    %v373 = vld [vmem:[#allocation5 + $0x3f8] sm:$0xf]
    %v374 = vld [vmem:[#allocation5 + $0x3fc] sm:$0xf]
    %v375 = vld [vmem:[#allocation5 + $0x400] sm:$0xf]
    %v376 = vld [vmem:[#allocation5 + $0x404] sm:$0xf]
    %v377 = vld [vmem:[#allocation5 + $0x408] sm:$0xf]
    %v378 = vld [vmem:[#allocation5 + $0x40c] sm:$0xf]
    %v379 = vld [vmem:[#allocation5 + $0x410] sm:$0xf]
    %v380 = vld [vmem:[#allocation5 + $0x414] sm:$0xf]
    %v381 = vld [vmem:[#allocation5 + $0x418] sm:$0xf]
    %v382 = vld [vmem:[#allocation5 + $0x41c] sm:$0xf]
    %v383 = vld [vmem:[#allocation5 + $0x420] sm:$0xf]
    %v384 = vld [vmem:[#allocation5 + $0x424] sm:$0xf]
    %v385 = vld [vmem:[#allocation5 + $0x428] sm:$0xf]
    %v386 = vld [vmem:[#allocation5 + $0x42c] sm:$0xf]
    %v387 = vld [vmem:[#allocation5 + $0x430] sm:$0xf]
    %v388 = vld [vmem:[#allocation5 + $0x434] sm:$0xf]
    %v389 = vld [vmem:[#allocation5 + $0x438] sm:$0xf]
    %v390 = vld [vmem:[#allocation5 + $0x43c] sm:$0xf]
    %v391 = vld [vmem:[#allocation5 + $0x440] sm:$0xf]
    %v392 = vld [vmem:[#allocation5 + $0x444] sm:$0xf]
    %v393 = vld [vmem:[#allocation5 + $0x448] sm:$0xf]
    %v394 = vld [vmem:[#allocation5 + $0x44c] sm:$0xf]
    %v395 = vld [vmem:[#allocation5 + $0x450] sm:$0xf]
    %v396 = vld [vmem:[#allocation5 + $0x454] sm:$0xf]
    %v397 = vld [vmem:[#allocation5 + $0x458] sm:$0xf]
    %v398 = vld [vmem:[#allocation5 + $0x45c] sm:$0xf]
    %v399 = vld [vmem:[#allocation5 + $0x460] sm:$0xf]
    %v400 = vld [vmem:[#allocation5 + $0x464] sm:$0xf]
    %v401 = vld [vmem:[#allocation5 + $0x468] sm:$0xf]
    %v402 = vld [vmem:[#allocation5 + $0x46c] sm:$0xf]
    %v403 = vld [vmem:[#allocation5 + $0x470] sm:$0xf]
    %v404 = vld [vmem:[#allocation5 + $0x474] sm:$0xf]
    %v405 = vld [vmem:[#allocation5 + $0x478] sm:$0xf]
    %v406 = vld [vmem:[#allocation5 + $0x47c] sm:$0xf]
    %v407 = vld [vmem:[#allocation5 + $0x480] sm:$0xf]
    %v408 = vld [vmem:[#allocation5 + $0x484] sm:$0xf]
    %v409 = vld [vmem:[#allocation5 + $0x488] sm:$0xf]
    %v410 = vld [vmem:[#allocation5 + $0x48c] sm:$0xf]
    %v411 = vld [vmem:[#allocation5 + $0x490] sm:$0xf]
    %v412 = vld [vmem:[#allocation5 + $0x494] sm:$0xf]
    %v413 = vld [vmem:[%s2] sm:$0x1]
    %v415 = vlaneseq
    %v416 = vshrl.u32 %v415, 7
    %v417 = vsub.s32 0, %v416
    %v418 = vrot.slane %v413, %v417
    %v714 = vunpack.c.l.b16 %v119
    %v715 = vunpack.c.l.b16 %v120
    %v716 = vunpack.c.l.b16 %v121
    %v717 = vunpack.c.l.b16 %v122
    %v718 = vunpack.c.l.b16 %v123
    %v719 = vunpack.c.l.b16 %v124
    %v720 = vunpack.c.l.b16 %v125
    %v721 = vunpack.c.l.b16 %v126
    %v722 = vunpack.c.l.b16 %v127
    %v723 = vunpack.c.l.b16 %v128
    %v724 = vunpack.c.l.b16 %v129
    %v725 = vunpack.c.l.b16 %v130
    %v726 = vunpack.c.l.b16 %v131
    %v727 = vunpack.c.l.b16 %v132
    %v728 = vunpack.c.l.b16 %v133
    %v729 = vunpack.c.l.b16 %v134
    %v730 = vunpack.c.l.b16 %v135
    %v731 = vunpack.c.l.b16 %v136
    %v732 = vunpack.c.l.b16 %v137
    %v733 = vunpack.c.l.b16 %v138
    %v734 = vunpack.c.l.b16 %v139
    %v735 = vunpack.c.l.b16 %v140
    %v736 = vunpack.c.l.b16 %v141
    %v737 = vunpack.c.l.b16 %v142
    %v738 = vunpack.c.l.b16 %v143
    %v739 = vunpack.c.l.b16 %v144
    %v740 = vunpack.c.l.b16 %v145
    %v741 = vunpack.c.l.b16 %v146
    %v742 = vunpack.c.l.b16 %v147
    %v743 = vunpack.c.l.b16 %v148
    %v744 = vunpack.c.l.b16 %v149
    %v745 = vunpack.c.l.b16 %v150
    %v746 = vunpack.c.l.b16 %v151
    %v747 = vunpack.c.l.b16 %v152
    %v748 = vunpack.c.l.b16 %v153
    %v749 = vunpack.c.l.b16 %v154
    %v750 = vunpack.c.l.b16 %v155
    %v751 = vunpack.c.l.b16 %v156
    %v752 = vunpack.c.l.b16 %v157
    %v753 = vunpack.c.l.b16 %v158
    %v754 = vunpack.c.l.b16 %v159
    %v755 = vunpack.c.l.b16 %v160
    %v756 = vunpack.c.l.b16 %v161
    %v757 = vunpack.c.l.b16 %v162
    %v758 = vunpack.c.l.b16 %v163
    %v759 = vunpack.c.l.b16 %v164
    %v760 = vunpack.c.l.b16 %v165
    %v761 = vunpack.c.l.b16 %v166
    %v762 = vunpack.c.l.b16 %v167
    %v763 = vunpack.c.l.b16 %v168
    %v764 = vunpack.c.l.b16 %v169
    %v765 = vunpack.c.l.b16 %v170
    %v766 = vunpack.c.l.b16 %v171
    %v767 = vunpack.c.l.b16 %v172
    %v768 = vunpack.c.l.b16 %v173
    %v769 = vunpack.c.l.b16 %v174
    %v770 = vunpack.c.l.b16 %v175
    %v771 = vunpack.c.l.b16 %v176
    %v772 = vunpack.c.l.b16 %v177
    %v773 = vunpack.c.l.b16 %v178
    %v774 = vunpack.c.l.b16 %v179
    %v775 = vunpack.c.l.b16 %v180
    %v776 = vunpack.c.l.b16 %v181
    %v777 = vunpack.c.l.b16 %v182
    %v778 = vunpack.c.l.b16 %v183
    %v779 = vunpack.c.l.b16 %v184
    %v780 = vunpack.c.l.b16 %v185
    %v781 = vunpack.c.l.b16 %v186
    %v782 = vunpack.c.l.b16 %v187
    %v783 = vunpack.c.l.b16 %v188
    %v784 = vunpack.c.l.b16 %v189
    %v785 = vunpack.c.l.b16 %v190
    %v786 = vunpack.c.l.b16 %v191
    %v787 = vunpack.c.l.b16 %v192
    %v788 = vunpack.c.l.b16 %v193
    %v789 = vunpack.c.l.b16 %v194
    %v790 = vunpack.c.l.b16 %v195
    %v791 = vunpack.c.l.b16 %v196
    %v792 = vunpack.c.l.b16 %v197
    %v793 = vunpack.c.l.b16 %v198
    %v794 = vunpack.c.l.b16 %v199
    %v795 = vunpack.c.l.b16 %v200
    %v796 = vunpack.c.l.b16 %v201
    %v797 = vunpack.c.l.b16 %v202
    %v798 = vunpack.c.l.b16 %v203
    %v799 = vunpack.c.l.b16 %v204
    %v800 = vunpack.c.l.b16 %v205
    %v801 = vunpack.c.l.b16 %v206
    %v802 = vunpack.c.l.b16 %v207
    %v803 = vunpack.c.l.b16 %v208
    %v804 = vunpack.c.l.b16 %v209
    %v805 = vunpack.c.l.b16 %v210
    %v806 = vunpack.c.l.b16 %v211
    %v807 = vunpack.c.l.b16 %v212
    %v808 = vunpack.c.l.b16 %v213
    %v809 = vunpack.c.l.b16 %v214
    %v810 = vunpack.c.l.b16 %v215
    %v811 = vunpack.c.l.b16 %v216
    %v812 = vunpack.c.l.b16 %v217
    %v813 = vunpack.c.l.b16 %v218
    %v814 = vunpack.c.l.b16 %v219
    %v815 = vunpack.c.l.b16 %v220
    %v816 = vunpack.c.l.b16 %v221
    %v817 = vunpack.c.l.b16 %v222
    %v818 = vunpack.c.l.b16 %v223
    %v819 = vunpack.c.l.b16 %v224
    %v820 = vunpack.c.l.b16 %v225
    %v821 = vunpack.c.l.b16 %v226
    %v822 = vunpack.c.l.b16 %v227
    %v823 = vunpack.c.l.b16 %v228
    %v824 = vunpack.c.l.b16 %v229
    %v825 = vunpack.c.l.b16 %v230
    %v826 = vunpack.c.l.b16 %v231
    %v827 = vunpack.c.l.b16 %v232
    %v828 = vunpack.c.l.b16 %v233
    %v829 = vunpack.c.l.b16 %v234
    %v830 = vunpack.c.l.b16 %v235
    %v831 = vunpack.c.l.b16 %v236
    %v832 = vunpack.c.l.b16 %v237
    %v833 = vunpack.c.l.b16 %v238
    %v834 = vunpack.c.l.b16 %v239
    %v835 = vunpack.c.l.b16 %v240
    %v836 = vunpack.c.l.b16 %v241
    %v837 = vunpack.c.l.b16 %v242
    %v838 = vunpack.c.l.b16 %v243
    %v839 = vunpack.c.l.b16 %v244
    %v840 = vunpack.c.l.b16 %v245
    %v841 = vunpack.c.l.b16 %v246
    %v842 = vunpack.c.l.b16 %v247
    %v843 = vunpack.c.l.b16 %v248
    %v844 = vunpack.c.l.b16 %v249
    %v845 = vunpack.c.l.b16 %v250
    %v846 = vunpack.c.l.b16 %v251
    %v847 = vunpack.c.l.b16 %v252
    %v848 = vunpack.c.l.b16 %v253
    %v849 = vunpack.c.l.b16 %v254
    %v850 = vunpack.c.l.b16 %v255
    %v851 = vunpack.c.l.b16 %v256
    %v852 = vunpack.c.l.b16 %v257
    %v853 = vunpack.c.l.b16 %v258
    %v854 = vunpack.c.l.b16 %v259
    %v855 = vunpack.c.l.b16 %v260
    %v856 = vunpack.c.l.b16 %v261
    %v857 = vunpack.c.l.b16 %v262
    %v858 = vunpack.c.l.b16 %v263
    %v859 = vunpack.c.l.b16 %v264
    %v860 = vunpack.c.l.b16 %v265
    %v861 = vunpack.c.l.b16 %v266
    %v862 = vunpack.c.l.b16 %v267
    %v863 = vunpack.c.l.b16 %v268
    %v864 = vunpack.c.l.b16 %v269
    %v865 = vunpack.c.l.b16 %v270
    %v866 = vunpack.c.l.b16 %v271
    %v867 = vunpack.c.l.b16 %v272
    %v868 = vunpack.c.l.b16 %v273
    %v869 = vunpack.c.l.b16 %v274
    %v870 = vunpack.c.l.b16 %v275
    %v871 = vunpack.c.l.b16 %v276
    %v872 = vunpack.c.l.b16 %v277
    %v873 = vunpack.c.l.b16 %v278
    %v874 = vunpack.c.l.b16 %v279
    %v875 = vunpack.c.l.b16 %v280
    %v876 = vunpack.c.l.b16 %v281
    %v877 = vunpack.c.l.b16 %v282
    %v878 = vunpack.c.l.b16 %v283
    %v879 = vunpack.c.l.b16 %v284
    %v880 = vunpack.c.l.b16 %v285
    %v881 = vunpack.c.l.b16 %v286
    %v882 = vunpack.c.l.b16 %v287
    %v883 = vunpack.c.l.b16 %v288
    %v884 = vunpack.c.l.b16 %v289
    %v885 = vunpack.c.l.b16 %v290
    %v886 = vunpack.c.l.b16 %v291
    %v887 = vunpack.c.l.b16 %v292
    %v888 = vunpack.c.l.b16 %v293
    %v889 = vunpack.c.l.b16 %v294
    %v890 = vunpack.c.l.b16 %v295
    %v891 = vunpack.c.l.b16 %v296
    %v892 = vunpack.c.l.b16 %v297
    %v893 = vunpack.c.l.b16 %v298
    %v894 = vunpack.c.l.b16 %v299
    %v895 = vunpack.c.l.b16 %v300
    %v896 = vunpack.c.l.b16 %v301
    %v897 = vunpack.c.l.b16 %v302
    %v898 = vunpack.c.l.b16 %v303
    %v899 = vunpack.c.l.b16 %v304
    %v900 = vunpack.c.l.b16 %v305
    %v901 = vunpack.c.l.b16 %v306
    %v902 = vunpack.c.l.b16 %v307
    %v903 = vunpack.c.l.b16 %v308
    %v904 = vunpack.c.l.b16 %v309
    %v905 = vunpack.c.l.b16 %v310
    %v906 = vunpack.c.l.b16 %v311
    %v907 = vunpack.c.l.b16 %v312
    %v908 = vunpack.c.l.b16 %v313
    %v909 = vunpack.c.l.b16 %v314
    %v910 = vunpack.c.l.b16 %v315
    %v911 = vunpack.c.l.b16 %v316
    %v912 = vunpack.c.l.b16 %v317
    %v913 = vunpack.c.l.b16 %v318
    %v914 = vunpack.c.l.b16 %v319
    %v915 = vunpack.c.l.b16 %v320
    %v916 = vunpack.c.l.b16 %v321
    %v917 = vunpack.c.l.b16 %v322
    %v918 = vunpack.c.l.b16 %v323
    %v919 = vunpack.c.l.b16 %v324
    %v920 = vunpack.c.l.b16 %v325
    %v921 = vunpack.c.l.b16 %v326
    %v922 = vunpack.c.l.b16 %v327
    %v923 = vunpack.c.l.b16 %v328
    %v924 = vunpack.c.l.b16 %v329
    %v925 = vunpack.c.l.b16 %v330
    %v926 = vunpack.c.l.b16 %v331
    %v927 = vunpack.c.l.b16 %v332
    %v928 = vunpack.c.l.b16 %v333
    %v929 = vunpack.c.l.b16 %v334
    %v930 = vunpack.c.l.b16 %v335
    %v931 = vunpack.c.l.b16 %v336
    %v932 = vunpack.c.l.b16 %v337
    %v933 = vunpack.c.l.b16 %v338
    %v934 = vunpack.c.l.b16 %v339
    %v935 = vunpack.c.l.b16 %v340
    %v936 = vunpack.c.l.b16 %v341
    %v937 = vunpack.c.l.b16 %v342
    %v938 = vunpack.c.l.b16 %v343
    %v939 = vunpack.c.l.b16 %v344
    %v940 = vunpack.c.l.b16 %v345
    %v941 = vunpack.c.l.b16 %v346
    %v942 = vunpack.c.l.b16 %v347
    %v943 = vunpack.c.l.b16 %v348
    %v944 = vunpack.c.l.b16 %v349
    %v945 = vunpack.c.l.b16 %v350
    %v946 = vunpack.c.l.b16 %v351
    %v947 = vunpack.c.l.b16 %v352
    %v948 = vunpack.c.l.b16 %v353
    %v949 = vunpack.c.l.b16 %v354
    %v950 = vunpack.c.l.b16 %v355
    %v951 = vunpack.c.l.b16 %v356
    %v952 = vunpack.c.l.b16 %v357
    %v953 = vunpack.c.l.b16 %v358
    %v954 = vunpack.c.l.b16 %v359
    %v955 = vunpack.c.l.b16 %v360
    %v956 = vunpack.c.l.b16 %v361
    %v957 = vunpack.c.l.b16 %v362
    %v958 = vunpack.c.l.b16 %v363
    %v959 = vunpack.c.l.b16 %v364
    %v960 = vunpack.c.l.b16 %v365
    %v961 = vunpack.c.l.b16 %v366
    %v962 = vunpack.c.l.b16 %v367
    %v963 = vunpack.c.l.b16 %v368
    %v964 = vunpack.c.l.b16 %v369
    %v965 = vunpack.c.l.b16 %v370
    %v966 = vunpack.c.l.b16 %v371
    %v967 = vunpack.c.l.b16 %v372
    %v968 = vunpack.c.l.b16 %v373
    %v969 = vunpack.c.l.b16 %v374
    %v970 = vunpack.c.l.b16 %v375
    %v971 = vunpack.c.l.b16 %v376
    %v972 = vunpack.c.l.b16 %v377
    %v973 = vunpack.c.l.b16 %v378
    %v974 = vunpack.c.l.b16 %v379
    %v975 = vunpack.c.l.b16 %v380
    %v976 = vunpack.c.l.b16 %v381
    %v977 = vunpack.c.l.b16 %v382
    %v978 = vunpack.c.l.b16 %v383
    %v979 = vunpack.c.l.b16 %v384
    %v980 = vunpack.c.l.b16 %v385
    %v981 = vunpack.c.l.b16 %v386
    %v982 = vunpack.c.l.b16 %v387
    %v983 = vunpack.c.l.b16 %v388
    %v984 = vunpack.c.l.b16 %v389
    %v985 = vunpack.c.l.b16 %v390
    %v986 = vunpack.c.l.b16 %v391
    %v987 = vunpack.c.l.b16 %v392
    %v988 = vunpack.c.l.b16 %v393
    %v989 = vunpack.c.l.b16 %v394
    %v990 = vunpack.c.l.b16 %v395
    %v991 = vunpack.c.l.b16 %v396
    %v992 = vunpack.c.l.b16 %v397
    %v993 = vunpack.c.l.b16 %v398
    %v994 = vunpack.c.l.b16 %v399
    %v995 = vunpack.c.l.b16 %v400
    %v996 = vunpack.c.l.b16 %v401
    %v997 = vunpack.c.l.b16 %v402
    %v998 = vunpack.c.l.b16 %v403
    %v999 = vunpack.c.l.b16 %v404
    %v1000 = vunpack.c.l.b16 %v405
    %v1001 = vunpack.c.l.b16 %v406
    %v1002 = vunpack.c.l.b16 %v407
    %v1003 = vunpack.c.l.b16 %v408
    %v1004 = vunpack.c.l.b16 %v409
    %v1005 = vunpack.c.l.b16 %v410
    %v1006 = vunpack.c.l.b16 %v411
    %v1007 = vunpack.c.l.b16 %v412
    %v1008 = vpack.c.b16 %v715, %v714
    %v1009 = vpack.c.b16 %v717, %v716
    %v1010 = vpack.c.b16 %v719, %v718
    %v1011 = vpack.c.b16 %v721, %v720
    %v1012 = vpack.c.b16 %v723, %v722
    %v1013 = vpack.c.b16 %v725, %v724
    %v1014 = vpack.c.b16 %v727, %v726
    %v1015 = vpack.c.b16 %v729, %v728
    %v1016 = vpack.c.b16 %v731, %v730
    %v1017 = vpack.c.b16 %v733, %v732
    %v1018 = vpack.c.b16 %v735, %v734
    %v1019 = vpack.c.b16 %v737, %v736
    %v1020 = vpack.c.b16 %v739, %v738
    %v1021 = vpack.c.b16 %v741, %v740
    %v1022 = vpack.c.b16 %v743, %v742
    %v1023 = vpack.c.b16 %v745, %v744
    %v1024 = vpack.c.b16 %v747, %v746
    %v1025 = vpack.c.b16 %v749, %v748
    %v1026 = vpack.c.b16 %v751, %v750
    %v1027 = vpack.c.b16 %v753, %v752
    %v1028 = vpack.c.b16 %v755, %v754
    %v1029 = vpack.c.b16 %v757, %v756
    %v1030 = vpack.c.b16 %v759, %v758
    %v1031 = vpack.c.b16 %v761, %v760
    %v1032 = vpack.c.b16 %v763, %v762
    %v1033 = vpack.c.b16 %v765, %v764
    %v1034 = vpack.c.b16 %v767, %v766
    %v1035 = vpack.c.b16 %v769, %v768
    %v1036 = vpack.c.b16 %v771, %v770
    %v1037 = vpack.c.b16 %v773, %v772
    %v1038 = vpack.c.b16 %v775, %v774
    %v1039 = vpack.c.b16 %v777, %v776
    %v1040 = vpack.c.b16 %v779, %v778
    %v1041 = vpack.c.b16 %v781, %v780
    %v1042 = vpack.c.b16 %v783, %v782
    %v1043 = vpack.c.b16 %v785, %v784
    %v1044 = vpack.c.b16 %v787, %v786
    %v1045 = vpack.c.b16 %v789, %v788
    %v1046 = vpack.c.b16 %v791, %v790
    %v1047 = vpack.c.b16 %v793, %v792
    %v1048 = vpack.c.b16 %v795, %v794
    %v1049 = vpack.c.b16 %v797, %v796
    %v1050 = vpack.c.b16 %v799, %v798
    %v1051 = vpack.c.b16 %v801, %v800
    %v1052 = vpack.c.b16 %v803, %v802
    %v1053 = vpack.c.b16 %v805, %v804
    %v1054 = vpack.c.b16 %v807, %v806
    %v1055 = vpack.c.b16 %v809, %v808
    %v1056 = vpack.c.b16 %v811, %v810
    %v1057 = vpack.c.b16 %v813, %v812
    %v1058 = vpack.c.b16 %v815, %v814
    %v1059 = vpack.c.b16 %v817, %v816
    %v1060 = vpack.c.b16 %v819, %v818
    %v1061 = vpack.c.b16 %v821, %v820
    %v1062 = vpack.c.b16 %v823, %v822
    %v1063 = vpack.c.b16 %v825, %v824
    %v1064 = vpack.c.b16 %v827, %v826
    %v1065 = vpack.c.b16 %v829, %v828
    %v1066 = vpack.c.b16 %v831, %v830
    %v1067 = vpack.c.b16 %v833, %v832
    %v1068 = vpack.c.b16 %v835, %v834
    %v1069 = vpack.c.b16 %v837, %v836
    %v1070 = vpack.c.b16 %v839, %v838
    %v1071 = vpack.c.b16 %v841, %v840
    %v1072 = vpack.c.b16 %v843, %v842
    %v1073 = vpack.c.b16 %v845, %v844
    %v1074 = vpack.c.b16 %v847, %v846
    %v1075 = vpack.c.b16 %v849, %v848
    %v1076 = vpack.c.b16 %v851, %v850
    %v1077 = vpack.c.b16 %v853, %v852
    %v1078 = vpack.c.b16 %v855, %v854
    %v1079 = vpack.c.b16 %v857, %v856
    %v1080 = vpack.c.b16 %v859, %v858
    %v1081 = vpack.c.b16 %v861, %v860
    %v1082 = vpack.c.b16 %v863, %v862
    %v1083 = vpack.c.b16 %v865, %v864
    %v1084 = vpack.c.b16 %v867, %v866
    %v1085 = vpack.c.b16 %v869, %v868
    %v1086 = vpack.c.b16 %v871, %v870
    %v1087 = vpack.c.b16 %v873, %v872
    %v1088 = vpack.c.b16 %v875, %v874
    %v1089 = vpack.c.b16 %v877, %v876
    %v1090 = vpack.c.b16 %v879, %v878
    %v1091 = vpack.c.b16 %v881, %v880
    %v1092 = vpack.c.b16 %v883, %v882
    %v1093 = vpack.c.b16 %v885, %v884
    %v1094 = vpack.c.b16 %v887, %v886
    %v1095 = vpack.c.b16 %v889, %v888
    %v1096 = vpack.c.b16 %v891, %v890
    %v1097 = vpack.c.b16 %v893, %v892
    %v1098 = vpack.c.b16 %v895, %v894
    %v1099 = vpack.c.b16 %v897, %v896
    %v1100 = vpack.c.b16 %v899, %v898
    %v1101 = vpack.c.b16 %v901, %v900
    %v1102 = vpack.c.b16 %v903, %v902
    %v1103 = vpack.c.b16 %v905, %v904
    %v1104 = vpack.c.b16 %v907, %v906
    %v1105 = vpack.c.b16 %v909, %v908
    %v1106 = vpack.c.b16 %v911, %v910
    %v1107 = vpack.c.b16 %v913, %v912
    %v1108 = vpack.c.b16 %v915, %v914
    %v1109 = vpack.c.b16 %v917, %v916
    %v1110 = vpack.c.b16 %v919, %v918
    %v1111 = vpack.c.b16 %v921, %v920
    %v1112 = vpack.c.b16 %v923, %v922
    %v1113 = vpack.c.b16 %v925, %v924
    %v1114 = vpack.c.b16 %v927, %v926
    %v1115 = vpack.c.b16 %v929, %v928
    %v1116 = vpack.c.b16 %v931, %v930
    %v1117 = vpack.c.b16 %v933, %v932
    %v1118 = vpack.c.b16 %v935, %v934
    %v1119 = vpack.c.b16 %v937, %v936
    %v1120 = vpack.c.b16 %v939, %v938
    %v1121 = vpack.c.b16 %v941, %v940
    %v1122 = vpack.c.b16 %v943, %v942
    %v1123 = vpack.c.b16 %v945, %v944
    %v1124 = vpack.c.b16 %v947, %v946
    %v1125 = vpack.c.b16 %v949, %v948
    %v1126 = vpack.c.b16 %v951, %v950
    %v1127 = vpack.c.b16 %v953, %v952
    %v1128 = vpack.c.b16 %v955, %v954
    %v1129 = vpack.c.b16 %v957, %v956
    %v1130 = vpack.c.b16 %v959, %v958
    %v1131 = vpack.c.b16 %v961, %v960
    %v1132 = vpack.c.b16 %v963, %v962
    %v1133 = vpack.c.b16 %v965, %v964
    %v1134 = vpack.c.b16 %v967, %v966
    %v1135 = vpack.c.b16 %v969, %v968
    %v1136 = vpack.c.b16 %v971, %v970
    %v1137 = vpack.c.b16 %v973, %v972
    %v1138 = vpack.c.b16 %v975, %v974
    %v1139 = vpack.c.b16 %v977, %v976
    %v1140 = vpack.c.b16 %v979, %v978
    %v1141 = vpack.c.b16 %v981, %v980
    %v1142 = vpack.c.b16 %v983, %v982
    %v1143 = vpack.c.b16 %v985, %v984
    %v1144 = vpack.c.b16 %v987, %v986
    %v1145 = vpack.c.b16 %v989, %v988
    %v1146 = vpack.c.b16 %v991, %v990
    %v1147 = vpack.c.b16 %v993, %v992
    %v1148 = vpack.c.b16 %v995, %v994
    %v1149 = vpack.c.b16 %v997, %v996
    %v1150 = vpack.c.b16 %v999, %v998
    %v1151 = vpack.c.b16 %v1001, %v1000
    %v1152 = vpack.c.b16 %v1003, %v1002
    %v1153 = vpack.c.b16 %v1005, %v1004
    %v1154 = vpack.c.b16 %v1007, %v1006
    %vm1302 = vcmask 392192
    %v1304 = vsel %vm1302, %v118, 0
    %1306 = vmatprep.subr.bf16.mxu0 0
    %1307 = vmatpush1.bf16.msra.mxu0 %v1008
    %1308 = vmatprep.subr.bf16.mxu0 0
    %1309 = vmatpush1.bf16.msra.mxu0 %v1009
    %1310 = vmatprep.subr.bf16.mxu0 0
    %1311 = vmatpush1.bf16.msra.mxu0 %v1010
    %1312 = vmatprep.subr.bf16.mxu0 0
    %1313 = vmatpush1.bf16.msra.mxu0 %v1011
    %1314 = vmatprep.subr.bf16.mxu0 0
    %1315 = vmatpush1.bf16.msra.mxu0 %v1012
    %1316 = vmatprep.subr.bf16.mxu0 0
    %1317 = vmatpush1.bf16.msra.mxu0 %v1013
    %1318 = vmatprep.subr.bf16.mxu0 0
    %1319 = vmatpush1.bf16.msra.mxu0 %v1014
    %1320 = vmatprep.subr.bf16.mxu0 0
    %1321 = vmatpush1.bf16.msra.mxu0 %v1015
    %1322 = vmatprep.subr.bf16.mxu0 0
    %1323 = vmatpush1.bf16.msra.mxu0 %v1016
    %1324 = vmatprep.subr.bf16.mxu0 0
    %1325 = vmatpush1.bf16.msra.mxu0 %v1017
    %1326 = vmatprep.subr.bf16.mxu0 0
    %1327 = vmatpush1.bf16.msra.mxu0 %v1018
    %1328 = vmatprep.subr.bf16.mxu0 0
    %1329 = vmatpush1.bf16.msra.mxu0 %v1019
    %1330 = vmatprep.subr.bf16.mxu0 0
    %1331 = vmatpush1.bf16.msra.mxu0 %v1020
    %1332 = vmatprep.subr.bf16.mxu0 0
    %1333 = vmatpush1.bf16.msra.mxu0 %v1021
    %1334 = vmatprep.subr.bf16.mxu0 0
    %1335 = vmatpush1.bf16.msra.mxu0 %v1022
    %1336 = vmatprep.subr.bf16.mxu0 0
    %1337 = vmatpush1.bf16.msra.mxu0 %v1023
    %1338 = vmatprep.mubr.bf16.mxu0 %v101
    %1339 = vmatmul.mubr.bf16.gmra.mrb[0].mxu0 %v100
    %v1340 = vpop.f32.mrb[0].mxu0
    %v1341 = vadd.f32 %v418, %v1340
    %v1342 = vpop.f32.mrb[0].mxu0
    %v1343 = vpop.f32.mrb[0].mxu0
    %v1344 = vpop.f32.mrb[0].mxu0
    %1345 = vdwg.mxu0
    %1346 = vmatprep.subr.bf16.mxu0 0
    %1347 = vmatpush1.bf16.msra.mxu0 %v1024
    %1348 = vmatprep.subr.bf16.mxu0 0
    %1349 = vmatpush1.bf16.msra.mxu0 %v1025
    %1350 = vmatprep.subr.bf16.mxu0 0
    %1351 = vmatpush1.bf16.msra.mxu0 %v1026
    %1352 = vmatprep.subr.bf16.mxu0 0
    %1353 = vmatpush1.bf16.msra.mxu0 %v1027
    %1354 = vmatprep.subr.bf16.mxu0 0
    %1355 = vmatpush1.bf16.msra.mxu0 %v1028
    %1356 = vmatprep.subr.bf16.mxu0 0
    %1357 = vmatpush1.bf16.msra.mxu0 %v1029
    %1358 = vmatprep.subr.bf16.mxu0 0
    %1359 = vmatpush1.bf16.msra.mxu0 %v1030
    %1360 = vmatprep.subr.bf16.mxu0 0
    %1361 = vmatpush1.bf16.msra.mxu0 %v1031
    %1362 = vmatprep.subr.bf16.mxu0 0
    %1363 = vmatpush1.bf16.msra.mxu0 %v1032
    %1364 = vmatprep.subr.bf16.mxu0 0
    %1365 = vmatpush1.bf16.msra.mxu0 %v1033
    %1366 = vmatprep.subr.bf16.mxu0 0
    %1367 = vmatpush1.bf16.msra.mxu0 %v1034
    %1368 = vmatprep.subr.bf16.mxu0 0
    %1369 = vmatpush1.bf16.msra.mxu0 %v1035
    %1370 = vmatprep.subr.bf16.mxu0 0
    %1371 = vmatpush1.bf16.msra.mxu0 %v1036
    %1372 = vmatprep.subr.bf16.mxu0 0
    %1373 = vmatpush1.bf16.msra.mxu0 %v1037
    %1374 = vmatprep.subr.bf16.mxu0 0
    %1375 = vmatpush1.bf16.msra.mxu0 %v1038
    %1376 = vmatprep.subr.bf16.mxu0 0
    %1377 = vmatpush1.bf16.msra.mxu0 %v1039
    %1378 = vmatprep.mubr.bf16.mxu0 %v103
    %1379 = vmatmul.mubr.bf16.gmra.mrb[0].mxu0 %v102
    %v1380 = vpop.f32.mrb[0].mxu0
    %v1381 = vadd.f32 %v1341, %v1380
    %v1382 = vpop.f32.mrb[0].mxu0
    %v1383 = vpop.f32.mrb[0].mxu0
    %v1384 = vpop.f32.mrb[0].mxu0
    %1385 = vdwg.mxu0
    %1386 = vmatprep.subr.bf16.mxu0 0
    %1387 = vmatpush1.bf16.msra.mxu0 %v1040
    %1388 = vmatprep.subr.bf16.mxu0 0
    %1389 = vmatpush1.bf16.msra.mxu0 %v1041
    %1390 = vmatprep.subr.bf16.mxu0 0
    %1391 = vmatpush1.bf16.msra.mxu0 %v1042
    %1392 = vmatprep.subr.bf16.mxu0 0
    %1393 = vmatpush1.bf16.msra.mxu0 %v1043
    %1394 = vmatprep.subr.bf16.mxu0 0
    %1395 = vmatpush1.bf16.msra.mxu0 %v1044
    %1396 = vmatprep.subr.bf16.mxu0 0
    %1397 = vmatpush1.bf16.msra.mxu0 %v1045
    %1398 = vmatprep.subr.bf16.mxu0 0
    %1399 = vmatpush1.bf16.msra.mxu0 %v1046
    %1400 = vmatprep.subr.bf16.mxu0 0
    %1401 = vmatpush1.bf16.msra.mxu0 %v1047
    %1402 = vmatprep.subr.bf16.mxu0 0
    %1403 = vmatpush1.bf16.msra.mxu0 %v1048
    %1404 = vmatprep.subr.bf16.mxu0 0
    %1405 = vmatpush1.bf16.msra.mxu0 %v1049
    %1406 = vmatprep.subr.bf16.mxu0 0
    %1407 = vmatpush1.bf16.msra.mxu0 %v1050
    %1408 = vmatprep.subr.bf16.mxu0 0
    %1409 = vmatpush1.bf16.msra.mxu0 %v1051
    %1410 = vmatprep.subr.bf16.mxu0 0
    %1411 = vmatpush1.bf16.msra.mxu0 %v1052
    %1412 = vmatprep.subr.bf16.mxu0 0
    %1413 = vmatpush1.bf16.msra.mxu0 %v1053
    %1414 = vmatprep.subr.bf16.mxu0 0
    %1415 = vmatpush1.bf16.msra.mxu0 %v1054
    %1416 = vmatprep.subr.bf16.mxu0 0
    %1417 = vmatpush1.bf16.msra.mxu0 %v1055
    %1418 = vmatprep.mubr.bf16.mxu0 %v105
    %1419 = vmatmul.mubr.bf16.gmra.mrb[0].mxu0 %v104
    %v1420 = vpop.f32.mrb[0].mxu0
    %v1421 = vadd.f32 %v1381, %v1420
    %v1422 = vpop.f32.mrb[0].mxu0
    %v1423 = vpop.f32.mrb[0].mxu0
    %v1424 = vpop.f32.mrb[0].mxu0
    %1425 = vdwg.mxu0
    %1426 = vmatprep.subr.bf16.mxu0 0
    %1427 = vmatpush1.bf16.msra.mxu0 %v1056
    %1428 = vmatprep.subr.bf16.mxu0 0
    %1429 = vmatpush1.bf16.msra.mxu0 %v1057
    %1430 = vmatprep.subr.bf16.mxu0 0
    %1431 = vmatpush1.bf16.msra.mxu0 %v1058
    %1432 = vmatprep.subr.bf16.mxu0 0
    %1433 = vmatpush1.bf16.msra.mxu0 %v1059
    %1434 = vmatprep.subr.bf16.mxu0 0
    %1435 = vmatpush1.bf16.msra.mxu0 %v1060
    %1436 = vmatprep.subr.bf16.mxu0 0
    %1437 = vmatpush1.bf16.msra.mxu0 %v1061
    %1438 = vmatprep.subr.bf16.mxu0 0
    %1439 = vmatpush1.bf16.msra.mxu0 %v1062
    %1440 = vmatprep.subr.bf16.mxu0 0
    %1441 = vmatpush1.bf16.msra.mxu0 %v1063
    %1442 = vmatprep.subr.bf16.mxu0 0
    %1443 = vmatpush1.bf16.msra.mxu0 %v1064
    %1444 = vmatprep.subr.bf16.mxu0 0
    %1445 = vmatpush1.bf16.msra.mxu0 %v1065
    %1446 = vmatprep.subr.bf16.mxu0 0
    %1447 = vmatpush1.bf16.msra.mxu0 %v1066
    %1448 = vmatprep.subr.bf16.mxu0 0
    %1449 = vmatpush1.bf16.msra.mxu0 %v1067
    %1450 = vmatprep.subr.bf16.mxu0 0
    %1451 = vmatpush1.bf16.msra.mxu0 %v1068
    %1452 = vmatprep.subr.bf16.mxu0 0
    %1453 = vmatpush1.bf16.msra.mxu0 %v1069
    %1454 = vmatprep.subr.bf16.mxu0 0
    %1455 = vmatpush1.bf16.msra.mxu0 %v1070
    %1456 = vmatprep.subr.bf16.mxu0 0
    %1457 = vmatpush1.bf16.msra.mxu0 %v1071
    %1458 = vmatprep.mubr.bf16.mxu0 %v107
    %1459 = vmatmul.mubr.bf16.gmra.mrb[0].mxu0 %v106
    %v1460 = vpop.f32.mrb[0].mxu0
    %v1461 = vadd.f32 %v1421, %v1460
    %v1462 = vpop.f32.mrb[0].mxu0
    %v1463 = vpop.f32.mrb[0].mxu0
    %v1464 = vpop.f32.mrb[0].mxu0
    %1465 = vdwg.mxu0
    %1466 = vmatprep.subr.bf16.mxu0 0
    %1467 = vmatpush1.bf16.msra.mxu0 %v1072
    %1468 = vmatprep.subr.bf16.mxu0 0
    %1469 = vmatpush1.bf16.msra.mxu0 %v1073
    %1470 = vmatprep.subr.bf16.mxu0 0
    %1471 = vmatpush1.bf16.msra.mxu0 %v1074
    %1472 = vmatprep.subr.bf16.mxu0 0
    %1473 = vmatpush1.bf16.msra.mxu0 %v1075
    %1474 = vmatprep.subr.bf16.mxu0 0
    %1475 = vmatpush1.bf16.msra.mxu0 %v1076
    %1476 = vmatprep.subr.bf16.mxu0 0
    %1477 = vmatpush1.bf16.msra.mxu0 %v1077
    %1478 = vmatprep.subr.bf16.mxu0 0
    %1479 = vmatpush1.bf16.msra.mxu0 %v1078
    %1480 = vmatprep.subr.bf16.mxu0 0
    %1481 = vmatpush1.bf16.msra.mxu0 %v1079
    %1482 = vmatprep.subr.bf16.mxu0 0
    %1483 = vmatpush1.bf16.msra.mxu0 %v1080
    %1484 = vmatprep.subr.bf16.mxu0 0
    %1485 = vmatpush1.bf16.msra.mxu0 %v1081
    %1486 = vmatprep.subr.bf16.mxu0 0
    %1487 = vmatpush1.bf16.msra.mxu0 %v1082
    %1488 = vmatprep.subr.bf16.mxu0 0
    %1489 = vmatpush1.bf16.msra.mxu0 %v1083
    %1490 = vmatprep.subr.bf16.mxu0 0
    %1491 = vmatpush1.bf16.msra.mxu0 %v1084
    %1492 = vmatprep.subr.bf16.mxu0 0
    %1493 = vmatpush1.bf16.msra.mxu0 %v1085
    %1494 = vmatprep.subr.bf16.mxu0 0
    %1495 = vmatpush1.bf16.msra.mxu0 %v1086
    %1496 = vmatprep.subr.bf16.mxu0 0
    %1497 = vmatpush1.bf16.msra.mxu0 %v1087
    %1498 = vmatprep.mubr.bf16.mxu0 %v109
    %1499 = vmatmul.mubr.bf16.gmra.mrb[0].mxu0 %v108
    %v1500 = vpop.f32.mrb[0].mxu0
    %v1501 = vadd.f32 %v1461, %v1500
    %v1502 = vpop.f32.mrb[0].mxu0
    %v1503 = vpop.f32.mrb[0].mxu0
    %v1504 = vpop.f32.mrb[0].mxu0
    %1505 = vdwg.mxu0
    %1506 = vmatprep.subr.bf16.mxu0 0
    %1507 = vmatpush1.bf16.msra.mxu0 %v1088
    %1508 = vmatprep.subr.bf16.mxu0 0
    %1509 = vmatpush1.bf16.msra.mxu0 %v1089
    %1510 = vmatprep.subr.bf16.mxu0 0
    %1511 = vmatpush1.bf16.msra.mxu0 %v1090
    %1512 = vmatprep.subr.bf16.mxu0 0
    %1513 = vmatpush1.bf16.msra.mxu0 %v1091
    %1514 = vmatprep.subr.bf16.mxu0 0
    %1515 = vmatpush1.bf16.msra.mxu0 %v1092
    %1516 = vmatprep.subr.bf16.mxu0 0
    %1517 = vmatpush1.bf16.msra.mxu0 %v1093
    %1518 = vmatprep.subr.bf16.mxu0 0
    %1519 = vmatpush1.bf16.msra.mxu0 %v1094
    %1520 = vmatprep.subr.bf16.mxu0 0
    %1521 = vmatpush1.bf16.msra.mxu0 %v1095
    %1522 = vmatprep.subr.bf16.mxu0 0
    %1523 = vmatpush1.bf16.msra.mxu0 %v1096
    %1524 = vmatprep.subr.bf16.mxu0 0
    %1525 = vmatpush1.bf16.msra.mxu0 %v1097
    %1526 = vmatprep.subr.bf16.mxu0 0
    %1527 = vmatpush1.bf16.msra.mxu0 %v1098
    %1528 = vmatprep.subr.bf16.mxu0 0
    %1529 = vmatpush1.bf16.msra.mxu0 %v1099
    %1530 = vmatprep.subr.bf16.mxu0 0
    %1531 = vmatpush1.bf16.msra.mxu0 %v1100
    %1532 = vmatprep.subr.bf16.mxu0 0
    %1533 = vmatpush1.bf16.msra.mxu0 %v1101
    %1534 = vmatprep.subr.bf16.mxu0 0
    %1535 = vmatpush1.bf16.msra.mxu0 %v1102
    %1536 = vmatprep.subr.bf16.mxu0 0
    %1537 = vmatpush1.bf16.msra.mxu0 %v1103
    %1538 = vmatprep.mubr.bf16.mxu0 %v111
    %1539 = vmatmul.mubr.bf16.gmra.mrb[0].mxu0 %v110
    %v1540 = vpop.f32.mrb[0].mxu0
    %v1541 = vadd.f32 %v1501, %v1540
    %v1542 = vpop.f32.mrb[0].mxu0
    %v1543 = vpop.f32.mrb[0].mxu0
    %v1544 = vpop.f32.mrb[0].mxu0
    %1545 = vdwg.mxu0
    %1546 = vmatprep.subr.bf16.mxu0 0
    %1547 = vmatpush1.bf16.msra.mxu0 %v1104
    %1548 = vmatprep.subr.bf16.mxu0 0
    %1549 = vmatpush1.bf16.msra.mxu0 %v1105
    %1550 = vmatprep.subr.bf16.mxu0 0
    %1551 = vmatpush1.bf16.msra.mxu0 %v1106
    %1552 = vmatprep.subr.bf16.mxu0 0
    %1553 = vmatpush1.bf16.msra.mxu0 %v1107
    %1554 = vmatprep.subr.bf16.mxu0 0
    %1555 = vmatpush1.bf16.msra.mxu0 %v1108
    %1556 = vmatprep.subr.bf16.mxu0 0
    %1557 = vmatpush1.bf16.msra.mxu0 %v1109
    %1558 = vmatprep.subr.bf16.mxu0 0
    %1559 = vmatpush1.bf16.msra.mxu0 %v1110
    %1560 = vmatprep.subr.bf16.mxu0 0
    %1561 = vmatpush1.bf16.msra.mxu0 %v1111
    %1562 = vmatprep.subr.bf16.mxu0 0
    %1563 = vmatpush1.bf16.msra.mxu0 %v1112
    %1564 = vmatprep.subr.bf16.mxu0 0
    %1565 = vmatpush1.bf16.msra.mxu0 %v1113
    %1566 = vmatprep.subr.bf16.mxu0 0
    %1567 = vmatpush1.bf16.msra.mxu0 %v1114
    %1568 = vmatprep.subr.bf16.mxu0 0
    %1569 = vmatpush1.bf16.msra.mxu0 %v1115
    %1570 = vmatprep.subr.bf16.mxu0 0
    %1571 = vmatpush1.bf16.msra.mxu0 %v1116
    %1572 = vmatprep.subr.bf16.mxu0 0
    %1573 = vmatpush1.bf16.msra.mxu0 %v1117
    %1574 = vmatprep.subr.bf16.mxu0 0
    %1575 = vmatpush1.bf16.msra.mxu0 %v1118
    %1576 = vmatprep.subr.bf16.mxu0 0
    %1577 = vmatpush1.bf16.msra.mxu0 %v1119
    %1578 = vmatprep.mubr.bf16.mxu0 %v113
    %1579 = vmatmul.mubr.bf16.gmra.mrb[0].mxu0 %v112
    %v1580 = vpop.f32.mrb[0].mxu0
    %v1581 = vadd.f32 %v1541, %v1580
    %v1582 = vpop.f32.mrb[0].mxu0
    %v1583 = vpop.f32.mrb[0].mxu0
    %v1584 = vpop.f32.mrb[0].mxu0
    %1585 = vdwg.mxu0
    %1586 = vmatprep.subr.bf16.mxu0 0
    %1587 = vmatpush1.bf16.msra.mxu0 %v1120
    %1588 = vmatprep.subr.bf16.mxu0 0
    %1589 = vmatpush1.bf16.msra.mxu0 %v1121
    %1590 = vmatprep.subr.bf16.mxu0 0
    %1591 = vmatpush1.bf16.msra.mxu0 %v1122
    %1592 = vmatprep.subr.bf16.mxu0 0
    %1593 = vmatpush1.bf16.msra.mxu0 %v1123
    %1594 = vmatprep.subr.bf16.mxu0 0
    %1595 = vmatpush1.bf16.msra.mxu0 %v1124
    %1596 = vmatprep.subr.bf16.mxu0 0
    %1597 = vmatpush1.bf16.msra.mxu0 %v1125
    %1598 = vmatprep.subr.bf16.mxu0 0
    %1599 = vmatpush1.bf16.msra.mxu0 %v1126
    %1600 = vmatprep.subr.bf16.mxu0 0
    %1601 = vmatpush1.bf16.msra.mxu0 %v1127
    %1602 = vmatprep.subr.bf16.mxu0 0
    %1603 = vmatpush1.bf16.msra.mxu0 %v1128
    %1604 = vmatprep.subr.bf16.mxu0 0
    %1605 = vmatpush1.bf16.msra.mxu0 %v1129
    %1606 = vmatprep.subr.bf16.mxu0 0
    %1607 = vmatpush1.bf16.msra.mxu0 %v1130
    %1608 = vmatprep.subr.bf16.mxu0 0
    %1609 = vmatpush1.bf16.msra.mxu0 %v1131
    %1610 = vmatprep.subr.bf16.mxu0 0
    %1611 = vmatpush1.bf16.msra.mxu0 %v1132
    %1612 = vmatprep.subr.bf16.mxu0 0
    %1613 = vmatpush1.bf16.msra.mxu0 %v1133
    %1614 = vmatprep.subr.bf16.mxu0 0
    %1615 = vmatpush1.bf16.msra.mxu0 %v1134
    %1616 = vmatprep.subr.bf16.mxu0 0
    %1617 = vmatpush1.bf16.msra.mxu0 %v1135
    %1618 = vmatprep.mubr.bf16.mxu0 %v115
    %1619 = vmatmul.mubr.bf16.gmra.mrb[0].mxu0 %v114
    %v1620 = vpop.f32.mrb[0].mxu0
    %v1621 = vadd.f32 %v1581, %v1620
    %v1622 = vpop.f32.mrb[0].mxu0
    %v1623 = vpop.f32.mrb[0].mxu0
    %v1624 = vpop.f32.mrb[0].mxu0
    %1625 = vdwg.mxu0
    %1626 = vmatprep.subr.bf16.mxu0 0
    %1627 = vmatpush1.bf16.msra.mxu0 %v1136
    %1628 = vmatprep.subr.bf16.mxu0 0
    %1629 = vmatpush1.bf16.msra.mxu0 %v1137
    %1630 = vmatprep.subr.bf16.mxu0 0
    %1631 = vmatpush1.bf16.msra.mxu0 %v1138
    %1632 = vmatprep.subr.bf16.mxu0 0
    %1633 = vmatpush1.bf16.msra.mxu0 %v1139
    %1634 = vmatprep.subr.bf16.mxu0 0
    %1635 = vmatpush1.bf16.msra.mxu0 %v1140
    %1636 = vmatprep.subr.bf16.mxu0 0
    %1637 = vmatpush1.bf16.msra.mxu0 %v1141
    %1638 = vmatprep.subr.bf16.mxu0 0
    %1639 = vmatpush1.bf16.msra.mxu0 %v1142
    %1640 = vmatprep.subr.bf16.mxu0 0
    %1641 = vmatpush1.bf16.msra.mxu0 %v1143
    %1642 = vmatprep.subr.bf16.mxu0 0
    %1643 = vmatpush1.bf16.msra.mxu0 %v1144
    %1644 = vmatprep.subr.bf16.mxu0 0
    %1645 = vmatpush1.bf16.msra.mxu0 %v1145
    %1646 = vmatprep.subr.bf16.mxu0 0
    %1647 = vmatpush1.bf16.msra.mxu0 %v1146
    %1648 = vmatprep.subr.bf16.mxu0 0
    %1649 = vmatpush1.bf16.msra.mxu0 %v1147
    %1650 = vmatprep.subr.bf16.mxu0 0
    %1651 = vmatpush1.bf16.msra.mxu0 %v1148
    %1652 = vmatprep.subr.bf16.mxu0 0
    %1653 = vmatpush1.bf16.msra.mxu0 %v1149
    %1654 = vmatprep.subr.bf16.mxu0 0
    %1655 = vmatpush1.bf16.msra.mxu0 %v1150
    %1656 = vmatprep.subr.bf16.mxu0 0
    %1657 = vmatpush1.bf16.msra.mxu0 %v1151
    %1658 = vmatprep.mubr.bf16.mxu0 %v117
    %1659 = vmatmul.mubr.bf16.gmra.mrb[0].mxu0 %v116
    %v1660 = vpop.f32.mrb[0].mxu0
    %v1661 = vadd.f32 %v1621, %v1660
    %v1662 = vpop.f32.mrb[0].mxu0
    %v1663 = vpop.f32.mrb[0].mxu0
    %v1664 = vpop.f32.mrb[0].mxu0
    %1665 = vdwg.mxu0
    %1666 = vmatprep.subr.bf16.mxu0 0
    %1667 = vmatpush1.bf16.msra.mxu0 %v1152
    %1668 = vmatprep.subr.bf16.mxu0 0
    %1669 = vmatpush1.bf16.msra.mxu0 %v1153
    %1670 = vmatprep.subr.bf16.mxu0 0
    %1671 = vmatpush1.bf16.msra.mxu0 %v1154
    %1672 = vmatprep.subr.bf16.mxu0 0
    %1673 = vmatpush1.bf16.msra.mxu0 0
    %1674 = vmatprep.subr.bf16.mxu0 0
    %1675 = vmatpush1.bf16.msra.mxu0 0
    %1676 = vmatprep.subr.bf16.mxu0 0
    %1677 = vmatpush1.bf16.msra.mxu0 0
    %1678 = vmatprep.subr.bf16.mxu0 0
    %1679 = vmatpush1.bf16.msra.mxu0 0
    %1680 = vmatprep.subr.bf16.mxu0 0
    %1681 = vmatpush1.bf16.msra.mxu0 0
    %1682 = vmatprep.subr.bf16.mxu0 0
    %1683 = vmatpush1.bf16.msra.mxu0 0
    %1684 = vmatprep.subr.bf16.mxu0 0
    %1685 = vmatpush1.bf16.msra.mxu0 0
    %1686 = vmatprep.subr.bf16.mxu0 0
    %1687 = vmatpush1.bf16.msra.mxu0 0
    %1688 = vmatprep.subr.bf16.mxu0 0
    %1689 = vmatpush1.bf16.msra.mxu0 0
    %1690 = vmatprep.subr.bf16.mxu0 0
    %1691 = vmatpush1.bf16.msra.mxu0 0
    %1692 = vmatprep.subr.bf16.mxu0 0
    %1693 = vmatpush1.bf16.msra.mxu0 0
    %1694 = vmatprep.subr.bf16.mxu0 0
    %1695 = vmatpush1.bf16.msra.mxu0 0
    %1696 = vmatprep.subr.bf16.mxu0 0
    %1697 = vmatpush1.bf16.msra.mxu0 0
    %1698 = vmatprep.mubr.bf16.mxu0 0
    %1699 = vmatmul.mubr.bf16.gmra.mrb[0].mxu0 %v1304
    %v1700 = vpop.f32.mrb[0].mxu0
    %v1701 = vadd.f32 %v1661, %v1700
    %v1702 = vpop.f32.mrb[0].mxu0
    %v1703 = vpop.f32.mrb[0].mxu0
    %v1704 = vpop.f32.mrb[0].mxu0
    %1705 = vdwg.mxu0
    %v1706 = vmax.f32 %v1701, 0.0
    %v1707 = vpack.c.bf16 %v1706, %v1706
    %v1708 = vld [vmem:[#allocation7] sm:$0xf]
    %v1709 = vld [vmem:[#allocation7 + $0x4] sm:$0xf]
    %v1710 = vld [vmem:[#allocation7 + $0x8] sm:$0xf]
    %v1711 = vld [vmem:[#allocation7 + $0xc] sm:$0xf]
    %v1712 = vld [vmem:[#allocation7 + $0x10] sm:$0xf]
    %v1713 = vld [vmem:[#allocation7 + $0x14] sm:$0xf]
    %v1714 = vld [vmem:[#allocation7 + $0x18] sm:$0xf]
    %v1715 = vld [vmem:[#allocation7 + $0x1c] sm:$0xf]
    %v1716 = vld [vmem:[#allocation7 + $0x20] sm:$0xf]
    %v1717 = vld [vmem:[#allocation7 + $0x24] sm:$0xf]
    %v1718 = vld [vmem:[#allocation7 + $0x28] sm:$0xf]
    %v1719 = vld [vmem:[#allocation7 + $0x2c] sm:$0xf]
    %v1720 = vld [vmem:[#allocation7 + $0x30] sm:$0xf]
    %v1721 = vld [vmem:[#allocation7 + $0x34] sm:$0xf]
    %v1722 = vld [vmem:[#allocation7 + $0x38] sm:$0xf]
    %v1723 = vld [vmem:[#allocation7 + $0x3c] sm:$0xf]
    %v1724 = vld [vmem:[%s4] sm:$0x1]
    %v1726 = vlaneseq
    %v1727 = vshrl.u32 %v1726, 7
    %v1728 = vsub.s32 0, %v1727
    %v1729 = vrot.slane %v1724, %v1728
    %v1747 = vunpack.c.l.b16 %v1708
    %v1748 = vunpack.c.l.b16 %v1709
    %v1749 = vunpack.c.l.b16 %v1710
    %v1750 = vunpack.c.l.b16 %v1711
    %v1751 = vunpack.c.l.b16 %v1712
    %v1752 = vunpack.c.l.b16 %v1713
    %v1753 = vunpack.c.l.b16 %v1714
    %v1754 = vunpack.c.l.b16 %v1715
    %v1755 = vunpack.c.l.b16 %v1716
    %v1756 = vunpack.c.l.b16 %v1717
    %v1757 = vunpack.c.l.b16 %v1718
    %v1758 = vunpack.c.l.b16 %v1719
    %v1759 = vunpack.c.l.b16 %v1720
    %v1760 = vunpack.c.l.b16 %v1721
    %v1761 = vunpack.c.l.b16 %v1722
    %v1762 = vunpack.c.l.b16 %v1723
    %v1763 = vpack.c.b16 %v1748, %v1747
    %v1764 = vpack.c.b16 %v1750, %v1749
    %v1765 = vpack.c.b16 %v1752, %v1751
    %v1766 = vpack.c.b16 %v1754, %v1753
    %v1767 = vpack.c.b16 %v1756, %v1755
    %v1768 = vpack.c.b16 %v1758, %v1757
    %v1769 = vpack.c.b16 %v1760, %v1759
    %v1770 = vpack.c.b16 %v1762, %v1761
    %1779 = vmatprep.subr.bf16.mxu0 0
    %1780 = vmatpush1.bf16.msra.mxu0 %v1763
    %1781 = vmatprep.subr.bf16.mxu0 0
    %1782 = vmatpush1.bf16.msra.mxu0 %v1764
    %1783 = vmatprep.subr.bf16.mxu0 0
    %1784 = vmatpush1.bf16.msra.mxu0 %v1765
    %1785 = vmatprep.subr.bf16.mxu0 0
    %1786 = vmatpush1.bf16.msra.mxu0 %v1766
    %1787 = vmatprep.subr.bf16.mxu0 0
    %1788 = vmatpush1.bf16.msra.mxu0 %v1767
    %1789 = vmatprep.subr.bf16.mxu0 0
    %1790 = vmatpush1.bf16.msra.mxu0 %v1768
    %1791 = vmatprep.subr.bf16.mxu0 0
    %1792 = vmatpush1.bf16.msra.mxu0 %v1769
    %1793 = vmatprep.subr.bf16.mxu0 0
    %1794 = vmatpush1.bf16.msra.mxu0 %v1770
    %1795 = vmatprep.subr.bf16.mxu0 0
    %1796 = vmatpush1.bf16.msra.mxu0 0
    %1797 = vmatprep.subr.bf16.mxu0 0
    %1798 = vmatpush1.bf16.msra.mxu0 0
    %1799 = vmatprep.subr.bf16.mxu0 0
    %1800 = vmatpush1.bf16.msra.mxu0 0
    %1801 = vmatprep.subr.bf16.mxu0 0
    %1802 = vmatpush1.bf16.msra.mxu0 0
    %1803 = vmatprep.subr.bf16.mxu0 0
    %1804 = vmatpush1.bf16.msra.mxu0 0
    %1805 = vmatprep.subr.bf16.mxu0 0
    %1806 = vmatpush1.bf16.msra.mxu0 0
    %1807 = vmatprep.subr.bf16.mxu0 0
    %1808 = vmatpush1.bf16.msra.mxu0 0
    %1809 = vmatprep.subr.bf16.mxu0 0
    %1810 = vmatpush1.bf16.msra.mxu0 0
    %1811 = vmatprep.mubr.bf16.mxu0 0
    %1812 = vmatmul.mubr.bf16.gmra.mrb[0].mxu0 %v1707
    %v1813 = vpop.f32.mrb[0].mxu0
    %v1814 = vadd.f32 %v1729, %v1813
    %v1815 = vpop.f32.mrb[0].mxu0
    %v1816 = vpop.f32.mrb[0].mxu0
    %v1817 = vpop.f32.mrb[0].mxu0
    %1818 = vdwg.mxu0
    %v1819 = vmax.f32 %v1814, 0.0
    %v1820 = vpack.c.bf16 %v1819, %v1819
    %v1821 = vld [vmem:[#allocation8] sm:$0xf]
    %v1822 = vld [vmem:[#allocation8 + $0x4] sm:$0xf]
    %v1823 = vld [vmem:[#allocation8 + $0x8] sm:$0xf]
    %v1824 = vld [vmem:[#allocation8 + $0xc] sm:$0xf]
    %v1825 = vld [vmem:[#allocation8 + $0x10] sm:$0xf]
    %v1826 = vld [vmem:[#allocation8 + $0x14] sm:$0xf]
    %v1827 = vld [vmem:[#allocation8 + $0x18] sm:$0xf]
    %v1828 = vld [vmem:[#allocation8 + $0x1c] sm:$0xf]
    %v1829 = vld [vmem:[#allocation8 + $0x20] sm:$0xf]
    %v1830 = vld [vmem:[#allocation8 + $0x24] sm:$0xf]
    %v1831 = vld [vmem:[#allocation8 + $0x28] sm:$0xf]
    %v1832 = vld [vmem:[#allocation8 + $0x2c] sm:$0xf]
    %v1833 = vld [vmem:[#allocation8 + $0x30] sm:$0xf]
    %v1834 = vld [vmem:[#allocation8 + $0x34] sm:$0xf]
    %v1835 = vld [vmem:[#allocation8 + $0x38] sm:$0xf]
    %v1836 = vld [vmem:[#allocation8 + $0x3c] sm:$0xf]
    %v1837 = vld [vmem:[%s6] sm:$0x1]
    %v1839 = vlaneseq
    %v1840 = vshrl.u32 %v1839, 7
    %v1841 = vsub.s32 0, %v1840
    %v1842 = vrot.slane %v1837, %v1841
    %v1860 = vunpack.c.l.b16 %v1821
    %v1861 = vunpack.c.l.b16 %v1822
    %v1862 = vunpack.c.l.b16 %v1823
    %v1863 = vunpack.c.l.b16 %v1824
    %v1864 = vunpack.c.l.b16 %v1825
    %v1865 = vunpack.c.l.b16 %v1826
    %v1866 = vunpack.c.l.b16 %v1827
    %v1867 = vunpack.c.l.b16 %v1828
    %v1868 = vunpack.c.l.b16 %v1829
    %v1869 = vunpack.c.l.b16 %v1830
    %v1870 = vunpack.c.l.b16 %v1831
    %v1871 = vunpack.c.l.b16 %v1832
    %v1872 = vunpack.c.l.b16 %v1833
    %v1873 = vunpack.c.l.b16 %v1834
    %v1874 = vunpack.c.l.b16 %v1835
    %v1875 = vunpack.c.l.b16 %v1836
    %v1876 = vpack.c.b16 %v1861, %v1860
    %v1877 = vpack.c.b16 %v1863, %v1862
    %v1878 = vpack.c.b16 %v1865, %v1864
    %v1879 = vpack.c.b16 %v1867, %v1866
    %v1880 = vpack.c.b16 %v1869, %v1868
    %v1881 = vpack.c.b16 %v1871, %v1870
    %v1882 = vpack.c.b16 %v1873, %v1872
    %v1883 = vpack.c.b16 %v1875, %v1874
    %1892 = vmatprep.subr.bf16.mxu0 0
    %1893 = vmatpush1.bf16.msra.mxu0 %v1876
    %1894 = vmatprep.subr.bf16.mxu0 0
    %1895 = vmatpush1.bf16.msra.mxu0 %v1877
    %1896 = vmatprep.subr.bf16.mxu0 0
    %1897 = vmatpush1.bf16.msra.mxu0 %v1878
    %1898 = vmatprep.subr.bf16.mxu0 0
    %1899 = vmatpush1.bf16.msra.mxu0 %v1879
    %1900 = vmatprep.subr.bf16.mxu0 0
    %1901 = vmatpush1.bf16.msra.mxu0 %v1880
    %1902 = vmatprep.subr.bf16.mxu0 0
    %1903 = vmatpush1.bf16.msra.mxu0 %v1881
    %1904 = vmatprep.subr.bf16.mxu0 0
    %1905 = vmatpush1.bf16.msra.mxu0 %v1882
    %1906 = vmatprep.subr.bf16.mxu0 0
    %1907 = vmatpush1.bf16.msra.mxu0 %v1883
    %1908 = vmatprep.subr.bf16.mxu0 0
    %1909 = vmatpush1.bf16.msra.mxu0 0
    %1910 = vmatprep.subr.bf16.mxu0 0
    %1911 = vmatpush1.bf16.msra.mxu0 0
    %1912 = vmatprep.subr.bf16.mxu0 0
    %1913 = vmatpush1.bf16.msra.mxu0 0
    %1914 = vmatprep.subr.bf16.mxu0 0
    %1915 = vmatpush1.bf16.msra.mxu0 0
    %1916 = vmatprep.subr.bf16.mxu0 0
    %1917 = vmatpush1.bf16.msra.mxu0 0
    %1918 = vmatprep.subr.bf16.mxu0 0
    %1919 = vmatpush1.bf16.msra.mxu0 0
    %1920 = vmatprep.subr.bf16.mxu0 0
    %1921 = vmatpush1.bf16.msra.mxu0 0
    %1922 = vmatprep.subr.bf16.mxu0 0
    %1923 = vmatpush1.bf16.msra.mxu0 0
    %1924 = vmatprep.mubr.bf16.mxu0 0
    %1925 = vmatmul.mubr.bf16.gmra.mrb[0].mxu0 %v1820
    %v1926 = vpop.f32.mrb[0].mxu0
    %v1927 = vadd.f32 %v1842, %v1926
    %v1928 = vpop.f32.mrb[0].mxu0
    %v1929 = vpop.f32.mrb[0].mxu0
    %v1930 = vpop.f32.mrb[0].mxu0
    %1931 = vdwg.mxu0
    %1932 = vmax.xlane.f32.xlu0 %v1927
    %v1933 = vpop.xlane.xlu0 %1932
    %v1934 = vsub.f32 %v1927, %v1933
    %v1935 = vmul.f32 %v1934, 1.442695
    %v1936 = vpow.pop %v1935
    %1937 = vadd.xlane.f32.xlu0 %v1936
    %v1938 = vpop.xlane.xlu0 %1937
    %v1939 = vrcp.pop %v1938
    %v1940 = vmul.f32 %v1936, %v1939
    %1941 = vst [vmem:[#allocation10] sm:$0xff] %v1940
    // Predicated region
    $region46: #{tpu_custom_call.1} parent=1 // pred_check
      _
    $region47: #{tpu_custom_call.1} parent=1 // pred_check_branch
      %1943 = sbr.rel (0) target = $region49
    $region48: #{tpu_custom_call.1} parent=1 // pred_region
      %s1945 = ssub.s32 128, 128
      %1946 = vsyncadd [#allocation4], %s1945
      %s1948 = sshll.u32 [#allocation10], 4
      %s1949 = int_to_ptr.vmem [resolvable:$true] %s1948
      %1951 = dma.vmem_to_hbm [thread:$0]  %s1949, 128, %s7, [#allocation4]
    $region49: #{tpu_custom_call.1} parent=1 // pred_fallthru
      _
    // Predicated region
    $region50: #{tpu_custom_call.1} parent=1 // pred_check
      _
    $region51: #{tpu_custom_call.1} parent=1 // pred_check_branch
      %1953 = sbr.rel (0) target = $region53
    $region52: #{tpu_custom_call.1} parent=1 // pred_region
      %1954 = dma.done [#allocation4], 128
    $region53: #{tpu_custom_call.1} parent=1 // pred_fallthru
      _
    %1955 = vsyncpa [#allocation3], 1
    %1956 = vsyncpa [#allocation6], 1
    %1957 = vsyncpa [#allocation9], 1
    %1958 = vsyncpa [#allocation4], 1

</llo_original>
